<compile_context>
chip_gen: v7x
topology: tpu7x:2x2x1
jax: 0.10.0
libtpu: 0.0.40
codegen_flags: <defaults>
</compile_context>

<pallas_src>
import math

import jax
import jax.numpy as jnp
from jax.experimental import pallas as pl
from jax.experimental.pallas import tpu as pltpu

BN_EPS = 1e-5


# ----------------------------- small helpers --------------------------------

def _round_up(x, m):
    return ((x + m - 1) // m) * m


def _pick_tile(dim, candidates):
    for c in candidates:
        if dim % c == 0:
            return c
    return dim


def _pad_rows(a, rows):
    if a.shape[0] == rows:
        return a
    return jnp.pad(a, ((0, rows - a.shape[0]), (0, 0)))


# ----------------------------- Pallas kernels -------------------------------

def _matmul_stats_kernel(a_ref, b_ref, y_ref, sum_ref, sq_ref, acc_ref):
    """Tiled matmul with f32 accumulator; on the last K step also emits per-tile
    per-channel sum and sum-of-squares (BN batch-stats epilogue)."""
    k = pl.program_id(2)

    @pl.when(k == 0)
    def _():
        acc_ref[...] = jnp.zeros_like(acc_ref)

    acc_ref[...] += jnp.dot(a_ref[...], b_ref[...],
                            preferred_element_type=jnp.float32)

    @pl.when(k == pl.num_programs(2) - 1)
    def _():
        y = acc_ref[...]
        y_ref[...] = y
        sum_ref[...] = jnp.sum(y, axis=0, keepdims=True)[None]
        sq_ref[...] = jnp.sum(y * y, axis=0, keepdims=True)[None]


def _affine_relu_kernel(y_ref, s_ref, b_ref, o_ref):
    # relu(BN(y)) with precomputed per-channel scale/shift.
    o_ref[...] = jnp.maximum(y_ref[...] * s_ref[...] + b_ref[...], 0.0)


def _affine_res_relu_kernel(y_ref, r_ref, s_ref, b_ref, o_ref):
    # relu(BN(y) + identity) (BasicBlock tail, no downsample).
    o_ref[...] = jnp.maximum(y_ref[...] * s_ref[...] + b_ref[...] + r_ref[...], 0.0)


def _affine2_res_relu_kernel(y_ref, yd_ref, s_ref, b_ref, sd_ref, bd_ref, o_ref):
    # relu(BN2(y) + BN_down(y_down)) (BasicBlock tail with fused downsample-BN).
    o_ref[...] = jnp.maximum(y_ref[...] * s_ref[...] + b_ref[...]
                             + yd_ref[...] * sd_ref[...] + bd_ref[...], 0.0)


def _maxpool_kernel(p_ref, o_ref):
    # p: (9, tm, C) window taps -> max over taps.
    m = p_ref[0]
    for t in range(1, p_ref.shape[0]):
        m = jnp.maximum(m, p_ref[t])
    o_ref[...] = m


def _head_kernel(p_ref, w_ref, b_ref, o_ref):
    # Fused global average pool + Linear. p: (HW, N, C).
    acc = p_ref[0]
    for t in range(1, p_ref.shape[0]):
        acc = acc + p_ref[t]
    pooled = acc * (1.0 / p_ref.shape[0])                      # (N, C), f32
    o_ref[...] = (jnp.dot(pooled, w_ref[...], preferred_element_type=jnp.float32)
                  + b_ref[...])


# ----------------------------- Pallas wrappers -------------------------------

def conv2d_matmul(x_nhwc, w_mat, kh, kw, stride, pad):
    """conv via im2col (bf16) + tiled/pipelined MXU matmul with fused BN-stats epilogue.

    Returns (y_padded (Mp, cout) f32, col_sum (cout,), col_sq (cout,), true_M, out_nhwc_shape).
    """
    N, H, W, C = x_nhwc.shape
    Ho = (H + 2 * pad - kh) // stride + 1
    Wo = (W + 2 * pad - kw) // stride + 1
    Kp, cout = w_mat.shape          # weight already K-padded to a multiple of 128, bf16
    K = kh * kw * C
    M = N * Ho * Wo

    xb = x_nhwc.astype(jnp.bfloat16)
    if pad:
        xb = jnp.pad(xb, ((0, 0), (pad, pad), (pad, pad), (0, 0)))
    cols = [xb[:, i:i + stride * Ho:stride, j:j + stride * Wo:stride, :]
            for i in range(kh) for j in range(kw)]
    patches = jnp.concatenate(cols, axis=-1).reshape(M, K)
    if Kp > K:
        patches = jnp.pad(patches, ((0, 0), (0, Kp - K)))

    tm = min(512, _round_up(M, 8))
    Mp = _round_up(M, tm)
    if Mp > M:
        patches = jnp.pad(patches, ((0, Mp - M), (0, 0)))
    tn = _pick_tile(cout, (256, 128, 64))
    tk = _pick_tile(Kp, (512, 256, 128))
    grid = (Mp // tm, cout // tn, Kp // tk)

    y, col_sum, col_sq = pl.pallas_call(
        _matmul_stats_kernel,
        grid=grid,
        in_specs=[pl.BlockSpec((tm, tk), lambda i, j, k: (i, k)),
                  pl.BlockSpec((tk, tn), lambda i, j, k: (k, j))],
        out_specs=(pl.BlockSpec((tm, tn), lambda i, j, k: (i, j)),
                   pl.BlockSpec((1, 1, tn), lambda i, j, k: (i, 0, j)),
                   pl.BlockSpec((1, 1, tn), lambda i, j, k: (i, 0, j))),
        out_shape=(jax.ShapeDtypeStruct((Mp, cout), jnp.float32),
                   jax.ShapeDtypeStruct((Mp // tm, 1, cout), jnp.float32),
                   jax.ShapeDtypeStruct((Mp // tm, 1, cout), jnp.float32)),
        scratch_shapes=[pltpu.VMEM((tm, tn), jnp.float32)],
        compiler_params=pltpu.CompilerParams(
            dimension_semantics=("parallel", "parallel", "arbitrary")),
        cost_estimate=pl.CostEstimate(
            flops=2 * Mp * cout * Kp,
            transcendentals=0,
            bytes_accessed=Mp * Kp * 2 + Kp * cout * 2 + Mp * cout * 4),
    )(patches, w_mat)

    # Tiny cross-tile stat reduction (Mp//tm rows) done in plain JAX.
    return y, jnp.sum(col_sum, axis=(0, 1)), jnp.sum(col_sq, axis=(0, 1)), M, (N, Ho, Wo, cout)


def _bn_scale_shift(col_sum, col_sq, count, gamma, beta):
    # Batch-statistics BN folded into a per-channel affine (scale, shift).
    mean = col_sum / count
    var = jnp.maximum(col_sq / count - mean * mean, 0.0)
    scale = gamma * jax.lax.rsqrt(var + BN_EPS)
    shift = beta - mean * scale
    return scale, shift


def _affine_call(kernel_fn, dense, vecs):
    """Tiled elementwise BN-apply kernels. dense: list of (Mp, C) f32; vecs: list of (C,)."""
    Mp, C = dense[0].shape
    lane_dense = (C == 64 and Mp % 2 == 0)   # present a full-128-lane view for C=64 stage
    if lane_dense:
        dense = [d.reshape(Mp // 2, 128) for d in dense]
        vecs = [jnp.tile(v, 2) for v in vecs]
    Mv, Cv = dense[0].shape
    tm = min(1024, _round_up(Mv, 8))
    Mvp = _round_up(Mv, tm)
    if Mvp > Mv:
        dense = [jnp.pad(d, ((0, Mvp - Mv), (0, 0))) for d in dense]

    out = pl.pallas_call(
        kernel_fn,
        grid=(Mvp // tm,),
        in_specs=([pl.BlockSpec((tm, Cv), lambda i: (i, 0)) for _ in dense]
                  + [pl.BlockSpec((1, Cv), lambda i: (0, 0)) for _ in vecs]),
        out_specs=pl.BlockSpec((tm, Cv), lambda i: (i, 0)),
        out_shape=jax.ShapeDtypeStruct((Mvp, Cv), jnp.float32),
        compiler_params=pltpu.CompilerParams(dimension_semantics=("parallel",)),
    )(*dense, *[v.reshape(1, Cv) for v in vecs])

    out = out[:Mv]
    if lane_dense:
        out = out.reshape(Mp, 64)
    return out


def pallas_maxpool3x3s2(x):
    # MaxPool2d(kernel_size=3, stride=2, padding=1); x is NHWC (post-ReLU, so >= 0
    # and zero padding is max-safe).
    N, H, W, C = x.shape
    Ho = (H + 2 - 3) // 2 + 1
    Wo = (W + 2 - 3) // 2 + 1
    xp = jnp.pad(x, ((0, 0), (1, 1), (1, 1), (0, 0)))
    taps = [xp[:, i:i + 2 * Ho:2, j:j + 2 * Wo:2, :] for i in range(3) for j in range(3)]
    M = N * Ho * Wo
    p = jnp.stack(taps, axis=0).reshape(9, M, C)

    if C == 64 and M % 2 == 0:       # lane-dense view
        p = p.reshape(9, M // 2, 128)
    _, Mv, Cv = p.shape
    tm = min(1024, _round_up(Mv, 8))
    Mvp = _round_up(Mv, tm)
    if Mvp > Mv:
        p = jnp.pad(p, ((0, 0), (0, Mvp - Mv), (0, 0)))

    y = pl.pallas_call(
        _maxpool_kernel,
        grid=(Mvp // tm,),
        in_specs=[pl.BlockSpec((9, tm, Cv), lambda i: (0, i, 0))],
        out_specs=pl.BlockSpec((tm, Cv), lambda i: (i, 0)),
        out_shape=jax.ShapeDtypeStruct((Mvp, Cv), jnp.float32),
        compiler_params=pltpu.CompilerParams(dimension_semantics=("parallel",)),
    )(p)
    return y[:Mv].reshape(N, Ho, Wo, C)


def pallas_head(x_nhwc, w, bias):
    # Fused AdaptiveAvgPool2d((1,1)) + Linear.
    N, H, W, C = x_nhwc.shape
    HW = H * W
    num_classes = w.shape[1]
    p = jnp.transpose(x_nhwc.reshape(N, HW, C), (1, 0, 2))    # (HW, N, C)
    return pl.pallas_call(
        _head_kernel,
        grid=(1,),
        in_specs=[pl.BlockSpec((HW, N, C), lambda i: (0, 0, 0)),
                  pl.BlockSpec((C, num_classes), lambda i: (0, 0)),
                  pl.BlockSpec((1, num_classes), lambda i: (0, 0))],
        out_specs=pl.BlockSpec((N, num_classes), lambda i: (0, 0)),
        out_shape=jax.ShapeDtypeStruct((N, num_classes), jnp.float32),
    )(p, w, bias.reshape(1, num_classes))


# ----------------------------- Parameters ------------------------------------

def _conv_weight(key, cout, cin, kh, kw):
    # kaiming_normal_(mode='fan_out', nonlinearity='relu'); stored in matmul form
    # (kh*kw*cin, cout), K zero-padded to a multiple of 128, cast to bf16 for the MXU.
    fan_out = cout * kh * kw
    std = math.sqrt(2.0 / fan_out)
    w = jax.random.normal(key, (cout, cin, kh, kw), jnp.float32) * std
    w = jnp.transpose(w, (2, 3, 1, 0)).reshape(kh * kw * cin, cout)
    K = kh * kw * cin
    Kp = _round_up(K, 128)
    if Kp > K:
        w = jnp.pad(w, ((0, Kp - K), (0, 0)))
    return w.astype(jnp.bfloat16)


def init_resnet_params(key, layers=(1, 1, 1, 1), num_classes=24):
    keys = iter(jax.random.split(key, 256))
    params = {
        "conv1_w": _conv_weight(next(keys), 64, 1, 7, 7),
        "bn1_g": jnp.ones((64,), jnp.float32),
        "bn1_b": jnp.zeros((64,), jnp.float32),
    }
    inplanes = 64
    stages = []
    for stage_idx, (planes, nblocks) in enumerate(zip((64, 128, 256, 512), layers)):
        stage_stride = 1 if stage_idx == 0 else 2
        stage = []
        for bi in range(nblocks):
            s = stage_stride if bi == 0 else 1
            blk = {
                "stride": s,
                "w1": _conv_weight(next(keys), planes, inplanes, 3, 3),
                "g1": jnp.ones((planes,), jnp.float32),
                "b1": jnp.zeros((planes,), jnp.float32),
                "w2": _conv_weight(next(keys), planes, planes, 3, 3),
                "g2": jnp.ones((planes,), jnp.float32),
                "b2": jnp.zeros((planes,), jnp.float32),
            }
            if s != 1 or inplanes != planes:     # downsample = conv1x1 + BN
                blk["down_w"] = _conv_weight(next(keys), planes, inplanes, 1, 1)
                blk["down_g"] = jnp.ones((planes,), jnp.float32)
                blk["down_b"] = jnp.zeros((planes,), jnp.float32)
            stage.append(blk)
            inplanes = planes
        stages.append(stage)
    params["layers"] = stages
    fan_in = 512
    bound = 1.0 / math.sqrt(fan_in)
    params["fc_w"] = jax.random.uniform(next(keys), (fan_in, num_classes),
                                        jnp.float32, -bound, bound)
    params["fc_b"] = jax.random.uniform(next(keys), (num_classes,),
                                        jnp.float32, -bound, bound)
    return params


# ----------------------------- Forward pass -----------------------------------

def basic_block(x, p):
    planes = p["g1"].shape[0]
    s = p["stride"]

    # conv1 (3x3, stride s) -> BN(batch stats) -> ReLU
    y1, cs1, cq1, M1, shp1 = conv2d_matmul(x, p["w1"], 3, 3, s, 1)
    sc1, sh1 = _bn_scale_shift(cs1, cq1, M1, p["g1"], p["b1"])
    h = _affine_call(_affine_relu_kernel, [y1], [sc1, sh1])[:M1].reshape(shp1)

    # conv2 (3x3, stride 1) -> BN -> (+identity) -> ReLU
    y2, cs2, cq2, M2, shp2 = conv2d_matmul(h, p["w2"], 3, 3, 1, 1)
    sc2, sh2 = _bn_scale_shift(cs2, cq2, M2, p["g2"], p["b2"])
    Mp2 = y2.shape[0]

    if "down_w" in p:
        yd, csd, cqd, Md, _ = conv2d_matmul(x, p["down_w"], 1, 1, s, 0)
        scd, shd = _bn_scale_shift(csd, cqd, Md, p["down_g"], p["down_b"])
        yd = _pad_rows(yd, Mp2)
        out = _affine_call(_affine2_res_relu_kernel, [y2, yd], [sc2, sh2, scd, shd])
    else:
        r = _pad_rows(x.reshape(-1, planes), Mp2)
        out = _affine_call(_affine_res_relu_kernel, [y2, r], [sc2, sh2])
    return out[:M2].reshape(shp2)


def resnet_forward(params, x_nchw):
    x = jnp.transpose(x_nchw.astype(jnp.float32), (0, 2, 3, 1))   # NCHW -> NHWC

    # Stem: 7x7/2 conv + BN + ReLU, then 3x3/2 maxpool.
    y, cs, cq, M, shp = conv2d_matmul(x, params["conv1_w"], 7, 7, 2, 3)
    sc, sh = _bn_scale_shift(cs, cq, M, params["bn1_g"], params["bn1_b"])
    x = _affine_call(_affine_relu_kernel, [y], [sc, sh])[:M].reshape(shp)
    x = pallas_maxpool3x3s2(x)

    for stage in params["layers"]:
        for blk in stage:
            x = basic_block(x, blk)

    return pallas_head(x, params["fc_w"], params["fc_b"])        # (N, num_classes)


if __name__ == "__main__":
    key = jax.random.PRNGKey(0)
    kp, kx = jax.random.split(key)
    params = init_resnet_params(kp, layers=(1, 1, 1, 1), num_classes=24)
    x = jax.random.normal(kx, (2, 1, 64, 64), jnp.float32)        # NCHW, 1 input channel
    out = resnet_forward(params, x)
    out = jax.block_until_ready(out)
    assert out.shape == (2, 24) and out.dtype == jnp.float32
    print("KERNEL_OK")
</pallas_src>

<mosaic_0001>
module attributes {stable_mosaic.version = 11 : i64} {
  func.func @_matmul_stats_kernel(%arg0: i32, %arg1: i32, %arg2: i32, %arg3: memref<512x128xbf16, #tpu.memory_space<vmem>>, %arg4: memref<128x64xbf16, #tpu.memory_space<vmem>>, %arg5: memref<512x64xf32, #tpu.memory_space<vmem>>, %arg6: memref<1x1x64xf32, #tpu.memory_space<vmem>>, %arg7: memref<1x1x64xf32, #tpu.memory_space<vmem>>, %arg8: memref<512x64xf32, #tpu.memory_space<vmem>>) attributes {dimension_semantics = [#tpu.dimension_semantics<parallel>, #tpu.dimension_semantics<parallel>, #tpu.dimension_semantics<arbitrary>], iteration_bounds = array<i64: 4, 1, 1>, scalar_prefetch = 0 : i64, scratch_operands = 1 : i64, tpu.core_type = #tpu.core_type<tc>, window_params = [{transform_indices = @transform_0, window_bounds = array<i64: 512, 128>}, {transform_indices = @transform_1, window_bounds = array<i64: 128, 64>}, {transform_indices = @transform_2, window_bounds = array<i64: 512, 64>}, {transform_indices = @transform_3, window_bounds = array<i64: 1, 1, 64>}, {transform_indices = @transform_4, window_bounds = array<i64: 1, 1, 64>}]} {
    %c0_i32 = arith.constant 0 : i32
    %0 = arith.cmpi eq, %arg2, %c0_i32 : i32
    %1 = arith.extui %0 : i1 to i32
    %c0_i32_0 = arith.constant 0 : i32
    %2 = arith.cmpi ne, %1, %c0_i32_0 : i32
    scf.if %2 {
      %cst_10 = arith.constant 0.000000e+00 : f32
      %12 = vector.broadcast %cst_10 : f32 to vector<512x64xf32>
      %c0_11 = arith.constant 0 : index
      %c0_12 = arith.constant 0 : index
      %13 = vector.load %arg8[%c0_11, %c0_12] : memref<512x64xf32, #tpu.memory_space<vmem>>, vector<512x64xf32>
      tpu.vector_store %arg8[%c0_11, %c0_12], %12 {strides = array<i32>} : memref<512x64xf32, #tpu.memory_space<vmem>>, vector<512x64xf32>,
    } else {
    }
    %c0 = arith.constant 0 : index
    %c0_1 = arith.constant 0 : index
    %3 = vector.load %arg8[%c0, %c0_1] : memref<512x64xf32, #tpu.memory_space<vmem>>, vector<512x64xf32>
    %c0_2 = arith.constant 0 : index
    %c0_3 = arith.constant 0 : index
    %4 = vector.load %arg3[%c0_2, %c0_3] : memref<512x128xbf16, #tpu.memory_space<vmem>>, vector<512x128xbf16>
    %c0_4 = arith.constant 0 : index
    %c0_5 = arith.constant 0 : index
    %5 = vector.load %arg4[%c0_4, %c0_5] : memref<128x64xbf16, #tpu.memory_space<vmem>>, vector<128x64xbf16>
    %cst = arith.constant dense<0.000000e+00> : vector<512x64xf32>
    %6 = tpu.matmul %4, %5, %cst {dimension_numbers = #tpu.dot_dimension_numbers<[1], [0], [0], [1], [0, 0, 1, 1], [], []>} : vector<512x128xbf16>, vector<128x64xbf16>, vector<512x64xf32> -> vector<512x64xf32>
    %7 = arith.addf %3, %6 : vector<512x64xf32>
    %c0_6 = arith.constant 0 : index
    %c0_7 = arith.constant 0 : index
    %8 = vector.load %arg8[%c0_6, %c0_7] : memref<512x64xf32, #tpu.memory_space<vmem>>, vector<512x64xf32>
    tpu.vector_store %arg8[%c0_6, %c0_7], %7 {strides = array<i32>} : memref<512x64xf32, #tpu.memory_space<vmem>>, vector<512x64xf32>,
    %c0_i32_8 = arith.constant 0 : i32
    %9 = arith.cmpi eq, %arg2, %c0_i32_8 : i32
    %10 = arith.extui %9 : i1 to i32
    %c0_i32_9 = arith.constant 0 : i32
    %11 = arith.cmpi ne, %10, %c0_i32_9 : i32
    scf.if %11 {
      %c0_10 = arith.constant 0 : index
      %c0_11 = arith.constant 0 : index
      %12 = vector.load %arg8[%c0_10, %c0_11] : memref<512x64xf32, #tpu.memory_space<vmem>>, vector<512x64xf32>
      %c0_12 = arith.constant 0 : index
      %c0_13 = arith.constant 0 : index
      %13 = vector.load %arg5[%c0_12, %c0_13] : memref<512x64xf32, #tpu.memory_space<vmem>>, vector<512x64xf32>
      tpu.vector_store %arg5[%c0_12, %c0_13], %12 {strides = array<i32>} : memref<512x64xf32, #tpu.memory_space<vmem>>, vector<512x64xf32>,
      %cst_14 = arith.constant dense<0.000000e+00> : vector<64xf32>
      %14 = vector.multi_reduction <add>, %12, %cst_14 [0] : vector<512x64xf32> to vector<64xf32>
      %15 = vector.shape_cast %14 : vector<64xf32> to vector<1x64xf32>
      %16 = vector.shape_cast %15 : vector<1x64xf32> to vector<1x1x64xf32>
      %c0_15 = arith.constant 0 : index
      %c0_16 = arith.constant 0 : index
      %c0_17 = arith.constant 0 : index
      %17 = vector.load %arg6[%c0_15, %c0_16, %c0_17] : memref<1x1x64xf32, #tpu.memory_space<vmem>>, vector<1x1x64xf32>
      tpu.vector_store %arg6[%c0_15, %c0_16, %c0_17], %16 {strides = array<i32>} : memref<1x1x64xf32, #tpu.memory_space<vmem>>, vector<1x1x64xf32>,
      %18 = arith.mulf %12, %12 : vector<512x64xf32>
      %cst_18 = arith.constant dense<0.000000e+00> : vector<64xf32>
      %19 = vector.multi_reduction <add>, %18, %cst_18 [0] : vector<512x64xf32> to vector<64xf32>
      %20 = vector.shape_cast %19 : vector<64xf32> to vector<1x64xf32>
      %21 = vector.shape_cast %20 : vector<1x64xf32> to vector<1x1x64xf32>
      %c0_19 = arith.constant 0 : index
      %c0_20 = arith.constant 0 : index
      %c0_21 = arith.constant 0 : index
      %22 = vector.load %arg7[%c0_19, %c0_20, %c0_21] : memref<1x1x64xf32, #tpu.memory_space<vmem>>, vector<1x1x64xf32>
      tpu.vector_store %arg7[%c0_19, %c0_20, %c0_21], %21 {strides = array<i32>} : memref<1x1x64xf32, #tpu.memory_space<vmem>>, vector<1x1x64xf32>,
    } else {
    }
    return
  }
  func.func @transform_0(%arg0: i32, %arg1: i32, %arg2: i32) -> (i32, i32) {
    %c0_i32 = arith.constant 0 : i32
    return %arg0, %arg2 : i32, i32
  }
  func.func @transform_1(%arg0: i32, %arg1: i32, %arg2: i32) -> (i32, i32) {
    %c0_i32 = arith.constant 0 : i32
    return %arg2, %arg1 : i32, i32
  }
  func.func @transform_2(%arg0: i32, %arg1: i32, %arg2: i32) -> (i32, i32) {
    %c0_i32 = arith.constant 0 : i32
    return %arg0, %arg1 : i32, i32
  }
  func.func @transform_3(%arg0: i32, %arg1: i32, %arg2: i32) -> (i32, i32, i32) {
    %c0_i32 = arith.constant 0 : i32
    %c0_i32_0 = arith.constant 0 : i32
    return %arg0, %c0_i32, %arg1 : i32, i32, i32
  }
  func.func @transform_4(%arg0: i32, %arg1: i32, %arg2: i32) -> (i32, i32, i32) {
    %c0_i32 = arith.constant 0 : i32
    %c0_i32_0 = arith.constant 0 : i32
    return %arg0, %c0_i32, %arg1 : i32, i32, i32
  }
}

</mosaic_0001>

<llo_original>
// kernel: tpu_custom_call.1
$region0: #{tpu_custom_call.1}
  #allocation0 [shape = 'u32[]', space=smem, size = 0x4, offset = 0x4, fixed_abs, tag = 'smem constant byte address 0x4 - core index']
  #allocation1 [shape = 'u32[144,128]{1,0:T(1,128)}', space=vmem, size = 0x12000, scoped, tag = 'internal scratch']
  #allocation2 [shape = 'f32[512,64]{1,0:T(8,128)}', space=vmem, size = 0x40000, scoped, tag = 'scratch operand']
  %s0 = inlined_call_operand.hbm [shape: bf16[2048,128], index: 0, kind: input, shape index: {}]
  %s1 = inlined_call_operand.vmem [shape: bf16[128,64], index: 1, kind: input, shape index: {}]
  %s2 = inlined_call_operand.vmem [shape: f32[2048,64], index: 2, kind: output, shape index: {0}]
  %s3 = inlined_call_operand.hbm [shape: f32[4,1,64], index: 3, kind: output, shape index: {1}]
  %s4 = inlined_call_operand.hbm [shape: f32[4,1,64], index: 4, kind: output, shape index: {2}]
  %5 = xla_tuple %s2, %s3, %s4
  %s6 = sld [smem:[#allocation0]]
  $region69: #{tpu_custom_call.1} parent=0
    _
  %s8 = ssub.s32 1, %s6
  %s9 = scalar_select 0, %s8, %s6
  $region1: #{tpu_custom_call.1} parent=0
    #allocation3 [shape = 'u8[262144]{0}', space=vmem, size = 0x40000, scoped, tag = 'input window, operand 0']
    #allocation4 [shape = 's32[2]{0}', space=sflag, size = 0x8, scoped, tag = 'scoped memory for tpu_custom_call.1']
    #allocation5 [shape = 's32[2]{0}', space=sflag, size = 0x8, scoped, tag = 'scoped memory for tpu_custom_call.1']
    #allocation6 [shape = 'u8[1024]{0}', space=vmem, size = 0x400, scoped, tag = 'output window, operand 1']
    #allocation7 [shape = 'u8[1024]{0}', space=vmem, size = 0x400, scoped, tag = 'output window, operand 2']
    #allocation8 [shape = 's32[2]{0}', space=sflag, size = 0x8, scoped, tag = 'scoped memory for tpu_custom_call.1']
    %10 = vsyncpa [#allocation4], 0
    %s11 = scalar_lea.sflag [#allocation4], 1
    %12 = vsyncpa %s11, 0
    %13 = vsyncpa [#allocation5], 0
    %s14 = scalar_lea.sflag [#allocation5], 1
    %15 = vsyncpa %s14, 0
    %16 = vsyncpa [#allocation8], 0
    %s17 = scalar_lea.sflag [#allocation8], 1
    %18 = vsyncpa %s17, 0
    loop: start=0, step=1, limit=6
    $region2: #{tpu_custom_call.1} parent=1 // loop_pre_header
      _
    $region3: #{tpu_custom_call.1} parent=1 // loop_header
      %s20 = sphi 0, %s24
      %p21 = scmp.ge.s32.totalorder %s20, 6
      %s27 = sphi 0, %s46
      %s28 = sphi 0, %s42
      %s29 = sphi 0, %s38
      %s30 = sphi 0, %s27
      %s31 = sphi 0, %s28
      %s32 = sphi 0, %s29
      %s33 = sphi 0, %s30
      %s34 = sphi 0, %s31
      %s35 = sphi 0, %s32
      %s51 = sphi 0, %s53
      %s54 = sphi 0, %s51
      %s55 = sphi 0, %s54
      %s71 = sphi 0, %s55
      %s79 = sphi 0, %s81
      %s82 = sphi 0, %s79
      %s83 = sphi 0, %s82
      %s99 = sphi 0, %s83
      %s107 = sphi 0, %s109
      %s110 = sphi 0, %s107
      %s111 = sphi 0, %s110
      %s127 = sphi 0, %s111
      %s135 = sphi 0, %s137
      %s138 = sphi 0, %s135
      %s139 = sphi 0, %s138
      %s155 = sphi 0, %s139
      %s163 = sphi 0, %s165
      %s166 = sphi 0, %s163
      %s167 = sphi 0, %s166
      %s183 = sphi 0, %s167
    $region4: #{tpu_custom_call.1} parent=1 // loop_header_branch
      %23 = sbr.rel (%p21) target = $region8
    $region5: #{tpu_custom_call.1} parent=1 // loop_body
      %s25 = ssub.s32 %s20, 1
      %s26 = ssub.s32 %s20, 2
      %s36 = sadd.s32 1, %s29
      %p37 = scmp.ge.s32.totalorder %s36, 1
      %s38 = scalar_select %p37, 0, %s36
      %s39 = sadd.s32 1, %s28
      %s40 = scalar_select %p37, %s39, %s28
      %p41 = scmp.ge.s32.totalorder %s40, 1
      %s42 = scalar_select %p41, 0, %s40
      %s43 = sadd.s32 1, %s27
      %s44 = scalar_select %p41, %s43, %s27
      %p45 = scmp.ge.s32.totalorder %s44, 4
      %s46 = scalar_select %p45, 0, %s44
      %s47 = ssub.s32 %s27, %s46
      %s48 = ssub.s32 %s29, %s38
      %s49 = sor.u32 %s47, %s48
      %p50 = scmp.eq.s32.totalorder %s49, 0
      %s52 = sadd.s32 %s51, 1
      %s53 = scalar_select %p50, %s51, %s52
      %p56 = pneg %p50
      %p57 = scmp.eq.s32.totalorder %s20, 3
      %p58 = por %p56, %p57
      %p59 = scmp.ne.s32.totalorder %s51, %s54
      %p60 = scmp.eq.s32.totalorder %s20, 0
      %p61 = por %p59, %p60
      %p62 = scmp.ne.s32.totalorder %s51, %s54
      %p63 = scmp.eq.s32.totalorder %s25, 3
      %p64 = por %p62, %p63
      %p65 = scmp.ne.s32.totalorder %s54, %s55
      %p66 = scmp.eq.s32.totalorder %s25, 0
      %p67 = por %p65, %p66
      %p68 = scmp.ne.s32.totalorder %s54, %s55
      %p69 = scmp.eq.s32.totalorder %s26, 3
      %p70 = por %p68, %p69
      %p72 = scmp.ne.s32.totalorder %s55, %s71
      %p73 = scmp.eq.s32.totalorder %s26, 0
      %p74 = por %p72, %p73
      %s75 = ssub.s32 %s29, %s38
      %s76 = ssub.s32 %s28, %s42
      %s77 = sor.u32 %s75, %s76
      %p78 = scmp.eq.s32.totalorder %s77, 0
      %s80 = sadd.s32 %s79, 1
      %s81 = scalar_select %p78, %s79, %s80
      %p84 = pneg %p78
      %p85 = scmp.eq.s32.totalorder %s20, 3
      %p86 = por %p84, %p85
      %p87 = scmp.ne.s32.totalorder %s79, %s82
      %p88 = scmp.eq.s32.totalorder %s20, 0
      %p89 = por %p87, %p88
      %p90 = scmp.ne.s32.totalorder %s79, %s82
      %p91 = scmp.eq.s32.totalorder %s25, 3
      %p92 = por %p90, %p91
      %p93 = scmp.ne.s32.totalorder %s82, %s83
      %p94 = scmp.eq.s32.totalorder %s25, 0
      %p95 = por %p93, %p94
      %p96 = scmp.ne.s32.totalorder %s82, %s83
      %p97 = scmp.eq.s32.totalorder %s26, 3
      %p98 = por %p96, %p97
      %p100 = scmp.ne.s32.totalorder %s83, %s99
      %p101 = scmp.eq.s32.totalorder %s26, 0
      %p102 = por %p100, %p101
      %s103 = ssub.s32 %s27, %s46
      %s104 = ssub.s32 %s28, %s42
      %s105 = sor.u32 %s103, %s104
      %p106 = scmp.eq.s32.totalorder %s105, 0
      %s108 = sadd.s32 %s107, 1
      %s109 = scalar_select %p106, %s107, %s108
      %p112 = pneg %p106
      %p113 = scmp.eq.s32.totalorder %s20, 3
      %p114 = por %p112, %p113
      %p115 = scmp.ne.s32.totalorder %s107, %s110
      %p116 = scmp.eq.s32.totalorder %s20, 0
      %p117 = por %p115, %p116
      %p118 = scmp.ne.s32.totalorder %s107, %s110
      %p119 = scmp.eq.s32.totalorder %s25, 3
      %p120 = por %p118, %p119
      %p121 = scmp.ne.s32.totalorder %s110, %s111
      %p122 = scmp.eq.s32.totalorder %s25, 0
      %p123 = por %p121, %p122
      %p124 = scmp.ne.s32.totalorder %s110, %s111
      %p125 = scmp.eq.s32.totalorder %s26, 3
      %p126 = por %p124, %p125
      %p128 = scmp.ne.s32.totalorder %s111, %s127
      %p129 = scmp.eq.s32.totalorder %s26, 0
      %p130 = por %p128, %p129
      %s131 = ssub.s32 %s27, %s46
      %s132 = ssub.s32 %s28, %s42
      %s133 = sor.u32 %s131, %s132
      %p134 = scmp.eq.s32.totalorder %s133, 0
      %s136 = sadd.s32 %s135, 1
      %s137 = scalar_select %p134, %s135, %s136
      %p140 = pneg %p134
      %p141 = scmp.eq.s32.totalorder %s20, 3
      %p142 = por %p140, %p141
      %p143 = scmp.ne.s32.totalorder %s135, %s138
      %p144 = scmp.eq.s32.totalorder %s20, 0
      %p145 = por %p143, %p144
      %p146 = scmp.ne.s32.totalorder %s135, %s138
      %p147 = scmp.eq.s32.totalorder %s25, 3
      %p148 = por %p146, %p147
      %p149 = scmp.ne.s32.totalorder %s138, %s139
      %p150 = scmp.eq.s32.totalorder %s25, 0
      %p151 = por %p149, %p150
      %p152 = scmp.ne.s32.totalorder %s138, %s139
      %p153 = scmp.eq.s32.totalorder %s26, 3
      %p154 = por %p152, %p153
      %p156 = scmp.ne.s32.totalorder %s139, %s155
      %p157 = scmp.eq.s32.totalorder %s26, 0
      %p158 = por %p156, %p157
      %s159 = ssub.s32 %s27, %s46
      %s160 = ssub.s32 %s28, %s42
      %s161 = sor.u32 %s159, %s160
      %p162 = scmp.eq.s32.totalorder %s161, 0
      %s164 = sadd.s32 %s163, 1
      %s165 = scalar_select %p162, %s163, %s164
      %p168 = pneg %p162
      %p169 = scmp.eq.s32.totalorder %s20, 3
      %p170 = por %p168, %p169
      %p171 = scmp.ne.s32.totalorder %s163, %s166
      %p172 = scmp.eq.s32.totalorder %s20, 0
      %p173 = por %p171, %p172
      %p174 = scmp.ne.s32.totalorder %s163, %s166
      %p175 = scmp.eq.s32.totalorder %s25, 3
      %p176 = por %p174, %p175
      %p177 = scmp.ne.s32.totalorder %s166, %s167
      %p178 = scmp.eq.s32.totalorder %s25, 0
      %p179 = por %p177, %p178
      %p180 = scmp.ne.s32.totalorder %s166, %s167
      %p181 = scmp.eq.s32.totalorder %s26, 3
      %p182 = por %p180, %p181
      %p184 = scmp.ne.s32.totalorder %s167, %s183
      %p185 = scmp.eq.s32.totalorder %s26, 0
      %p186 = por %p184, %p185
      %p187 = scmp.le.s32.totalorder 1, %s20
      %p188 = scmp.lt.s32.totalorder %s20, 5
      %p189 = pnand %p187, %p188
      %p190 = pneg %p189
      // Predicated region
      $region9: #{tpu_custom_call.1} parent=5 // pred_check
        _
      $region10: #{tpu_custom_call.1} parent=5 // pred_check_branch
        %192 = sbr.rel (%p189) target = $region12
      $region11: #{tpu_custom_call.1} parent=5 // pred_region
        %s193 = ssub.s32 %s20, 1
        // Predicated region
        $region13: #{tpu_custom_call.1} parent=11 // pred_check
          %p194 = pneg %p95
        $region14: #{tpu_custom_call.1} parent=11 // pred_check_branch
          %196 = sbr.rel (%p194) target = $region16
        $region15: #{tpu_custom_call.1} parent=11 // pred_region
          %s197 = smul.u32 16, %s32
          %p198 = scmp.lt.s32.totalorder %s197, 15
          %s199 = scalar_select %p198, %s197, 15
          %p200 = scmp.lt.s32.totalorder %s31, 0
          %s201 = scalar_select %p200, %s31, 0
          %s202 = sadd.s32 %s201, %s199
          %s203 = smul.addr %s202, 4
          %s204 = scalar_lea.vmem %s1, %s203
          %s205 = smul.u32 16, %s32
        $region16: #{tpu_custom_call.1} parent=11 // pred_fallthru
          _
      $region12: #{tpu_custom_call.1} parent=5 // pred_fallthru
        _
      %p206 = scmp.lt.s32.totalorder %s20, 4
      // Predicated region
      $region17: #{tpu_custom_call.1} parent=5 // pred_check
        %p207 = pneg %p206
      $region18: #{tpu_custom_call.1} parent=5 // pred_check_branch
        %209 = sbr.rel (%p207) target = $region20
      $region19: #{tpu_custom_call.1} parent=5 // pred_region
        // Predicated region
        $region21: #{tpu_custom_call.1} parent=19 // pred_check
          %p210 = pneg %p61
        $region22: #{tpu_custom_call.1} parent=19 // pred_check_branch
          %212 = sbr.rel (%p210) target = $region24
        $region23: #{tpu_custom_call.1} parent=19 // pred_region
          %s213 = sand.u32 %s51, 1
          %s214 = scalar_lea.sflag [#allocation4], %s213
          %s215 = sand.u32 %s51, 1
          %s216 = smul.addr %s215, 256
          %s217 = scalar_lea.vmem [#allocation3], %s216
          %s218 = smul.u32 64, %s27
          %s220 = ssub.s32 4096, 4096
          %221 = vsyncadd %s214, %s220
          %s222 = sadd.s32 %s29, %s218
          %s223 = smul.addr %s222, 64
          %s224 = scalar_lea.hbm %s0, %s223
          %s225 = sshll.u32 %s217, 4
          %s226 = int_to_ptr.vmem [resolvable:$true] %s225
          %231 = dma.hbm_to_vmem [thread:$0]  %s224, 4096, %s226, %s214, 64, 64, 4
        $region24: #{tpu_custom_call.1} parent=19 // pred_fallthru
          _
      $region20: #{tpu_custom_call.1} parent=5 // pred_fallthru
        _
      %p232 = scmp.le.s32.totalorder 1, %s20
      %p233 = scmp.lt.s32.totalorder %s20, 5
      %p234 = pnand %p232, %p233
      %p235 = pneg %p234
      // Predicated region
      $region25: #{tpu_custom_call.1} parent=5 // pred_check
        _
      $region26: #{tpu_custom_call.1} parent=5 // pred_check_branch
        %237 = sbr.rel (%p234) target = $region28
      $region27: #{tpu_custom_call.1} parent=5 // pred_region
        %s238 = ssub.s32 %s20, 1
        %s239 = sand.u32 %s54, 1
        %s240 = scalar_lea.sflag [#allocation4], %s239
        %s241 = sand.u32 %s54, 1
        %s242 = smul.addr %s241, 256
        %s243 = scalar_lea.vmem [#allocation3], %s242
        // Predicated region
        $region29: #{tpu_custom_call.1} parent=27 // pred_check
          %p244 = pneg %p67
        $region30: #{tpu_custom_call.1} parent=27 // pred_check_branch
          %246 = sbr.rel (%p244) target = $region32
        $region31: #{tpu_custom_call.1} parent=27 // pred_region
          %247 = dma.done %s240, 4096
        $region32: #{tpu_custom_call.1} parent=27 // pred_fallthru
          _
        %s248 = sand.u32 %s54, 1
        %s249 = scalar_lea.sflag [#allocation4], %s248
        %s250 = sand.u32 %s54, 1
        %s251 = smul.addr %s250, 256
        %s252 = scalar_lea.vmem [#allocation3], %s251
        %p253 = pneg %p67
        %p254 = pneg %p64
        %s255 = smul.u32 16, %s32
        %p256 = scmp.lt.s32.totalorder %s255, 15
        %s257 = scalar_select %p256, %s255, 15
        %p258 = scmp.lt.s32.totalorder %s31, 0
        %s259 = scalar_select %p258, %s31, 0
        %s260 = sadd.s32 %s259, %s257
        %s261 = smul.addr %s260, 4
        %s262 = scalar_lea.vmem %s1, %s261
        %p263 = pneg %p95
        %p264 = pneg %p92
        %p265 = pneg %p123
        %p266 = pneg %p120
        %s267 = smul.u32 64, %s30
        %p268 = scmp.lt.s32.totalorder %s267, 255
        %s269 = scalar_select %p268, %s267, 255
        %p270 = scmp.lt.s32.totalorder %s31, 0
        %s271 = scalar_select %p270, %s31, 0
        %s272 = sadd.s32 %s271, %s269
        %s273 = smul.addr %s272, 8
        %s274 = scalar_lea.vmem %s2, %s273
        %p275 = pneg %p151
        %p276 = pneg %p148
        %s277 = sand.u32 %s138, 1
        %s278 = scalar_lea.sflag [#allocation5], %s277
        %s279 = sand.u32 %s138, 1
        %s280 = scalar_lea.vmem [#allocation6], %s279
        %p281 = pneg %p179
        %p282 = pneg %p176
        %s283 = sand.u32 %s166, 1
        %s284 = scalar_lea.sflag [#allocation8], %s283
        %s285 = sand.u32 %s166, 1
        %s286 = scalar_lea.vmem [#allocation7], %s285
        %s287 = smul.u32 64, %s30
        %s288 = smul.u32 16, %s32
        %p289 = scmp.lt.s32.totalorder %s288, 15
        %s290 = scalar_select %p289, %s288, 15
        %p291 = scmp.lt.s32.totalorder %s31, 0
        %s292 = scalar_select %p291, %s31, 0
        %s293 = sadd.s32 %s292, %s290
        %s294 = smul.addr %s293, 4
        %s295 = scalar_lea.vmem %s1, %s294
        %s296 = smul.u32 16, %s32
        %s297 = smul.u32 64, %s30
        %p298 = scmp.lt.s32.totalorder %s297, 255
        %s299 = scalar_select %p298, %s297, 255
        %p300 = scmp.lt.s32.totalorder %s31, 0
        %s301 = scalar_select %p300, %s31, 0
        %s302 = sadd.s32 %s301, %s299
        %s303 = smul.addr %s302, 8
        %s304 = scalar_lea.vmem %s2, %s303
        %s305 = smul.u32 64, %s30
        %p307 = scmp.eq.s32.totalorder %s32, 0
        // Predicated region
        $region33: #{tpu_custom_call.1} parent=27 // pred_check
          %p308 = pneg %p307
        $region34: #{tpu_custom_call.1} parent=27 // pred_check_branch
          %310 = sbr.rel (%p308) target = $region36
        $region35: #{tpu_custom_call.1} parent=27 // pred_region
          %vm311 = vcmask 523264
          %312 = vst.msk [vmem:[#allocation2] sm:$0xff] %vm311, 0.0
          %313 = vst.msk [vmem:[#allocation2 + $0x8] sm:$0xff] %vm311, 0.0
          %314 = vst.msk [vmem:[#allocation2 + $0x10] sm:$0xff] %vm311, 0.0
          %315 = vst.msk [vmem:[#allocation2 + $0x18] sm:$0xff] %vm311, 0.0
          %316 = vst.msk [vmem:[#allocation2 + $0x20] sm:$0xff] %vm311, 0.0
          %317 = vst.msk [vmem:[#allocation2 + $0x28] sm:$0xff] %vm311, 0.0
          %318 = vst.msk [vmem:[#allocation2 + $0x30] sm:$0xff] %vm311, 0.0
          %319 = vst.msk [vmem:[#allocation2 + $0x38] sm:$0xff] %vm311, 0.0
          %320 = vst.msk [vmem:[#allocation2 + $0x40] sm:$0xff] %vm311, 0.0
          %321 = vst.msk [vmem:[#allocation2 + $0x48] sm:$0xff] %vm311, 0.0
          %322 = vst.msk [vmem:[#allocation2 + $0x50] sm:$0xff] %vm311, 0.0
          %323 = vst.msk [vmem:[#allocation2 + $0x58] sm:$0xff] %vm311, 0.0
          %324 = vst.msk [vmem:[#allocation2 + $0x60] sm:$0xff] %vm311, 0.0
          %325 = vst.msk [vmem:[#allocation2 + $0x68] sm:$0xff] %vm311, 0.0
          %326 = vst.msk [vmem:[#allocation2 + $0x70] sm:$0xff] %vm311, 0.0
          %327 = vst.msk [vmem:[#allocation2 + $0x78] sm:$0xff] %vm311, 0.0
          %328 = vst.msk [vmem:[#allocation2 + $0x80] sm:$0xff] %vm311, 0.0
          %329 = vst.msk [vmem:[#allocation2 + $0x88] sm:$0xff] %vm311, 0.0
          %330 = vst.msk [vmem:[#allocation2 + $0x90] sm:$0xff] %vm311, 0.0
          %331 = vst.msk [vmem:[#allocation2 + $0x98] sm:$0xff] %vm311, 0.0
          %332 = vst.msk [vmem:[#allocation2 + $0xa0] sm:$0xff] %vm311, 0.0
          %333 = vst.msk [vmem:[#allocation2 + $0xa8] sm:$0xff] %vm311, 0.0
          %334 = vst.msk [vmem:[#allocation2 + $0xb0] sm:$0xff] %vm311, 0.0
          %335 = vst.msk [vmem:[#allocation2 + $0xb8] sm:$0xff] %vm311, 0.0
          %336 = vst.msk [vmem:[#allocation2 + $0xc0] sm:$0xff] %vm311, 0.0
          %337 = vst.msk [vmem:[#allocation2 + $0xc8] sm:$0xff] %vm311, 0.0
          %338 = vst.msk [vmem:[#allocation2 + $0xd0] sm:$0xff] %vm311, 0.0
          %339 = vst.msk [vmem:[#allocation2 + $0xd8] sm:$0xff] %vm311, 0.0
          %340 = vst.msk [vmem:[#allocation2 + $0xe0] sm:$0xff] %vm311, 0.0
          %341 = vst.msk [vmem:[#allocation2 + $0xe8] sm:$0xff] %vm311, 0.0
          %342 = vst.msk [vmem:[#allocation2 + $0xf0] sm:$0xff] %vm311, 0.0
          %343 = vst.msk [vmem:[#allocation2 + $0xf8] sm:$0xff] %vm311, 0.0
          %344 = vst.msk [vmem:[#allocation2 + $0x100] sm:$0xff] %vm311, 0.0
          %345 = vst.msk [vmem:[#allocation2 + $0x108] sm:$0xff] %vm311, 0.0
          %346 = vst.msk [vmem:[#allocation2 + $0x110] sm:$0xff] %vm311, 0.0
          %347 = vst.msk [vmem:[#allocation2 + $0x118] sm:$0xff] %vm311, 0.0
          %348 = vst.msk [vmem:[#allocation2 + $0x120] sm:$0xff] %vm311, 0.0
          %349 = vst.msk [vmem:[#allocation2 + $0x128] sm:$0xff] %vm311, 0.0
          %350 = vst.msk [vmem:[#allocation2 + $0x130] sm:$0xff] %vm311, 0.0
          %351 = vst.msk [vmem:[#allocation2 + $0x138] sm:$0xff] %vm311, 0.0
          %352 = vst.msk [vmem:[#allocation2 + $0x140] sm:$0xff] %vm311, 0.0
          %353 = vst.msk [vmem:[#allocation2 + $0x148] sm:$0xff] %vm311, 0.0
          %354 = vst.msk [vmem:[#allocation2 + $0x150] sm:$0xff] %vm311, 0.0
          %355 = vst.msk [vmem:[#allocation2 + $0x158] sm:$0xff] %vm311, 0.0
          %356 = vst.msk [vmem:[#allocation2 + $0x160] sm:$0xff] %vm311, 0.0
          %357 = vst.msk [vmem:[#allocation2 + $0x168] sm:$0xff] %vm311, 0.0
          %358 = vst.msk [vmem:[#allocation2 + $0x170] sm:$0xff] %vm311, 0.0
          %359 = vst.msk [vmem:[#allocation2 + $0x178] sm:$0xff] %vm311, 0.0
          %360 = vst.msk [vmem:[#allocation2 + $0x180] sm:$0xff] %vm311, 0.0
          %361 = vst.msk [vmem:[#allocation2 + $0x188] sm:$0xff] %vm311, 0.0
          %362 = vst.msk [vmem:[#allocation2 + $0x190] sm:$0xff] %vm311, 0.0
          %363 = vst.msk [vmem:[#allocation2 + $0x198] sm:$0xff] %vm311, 0.0
          %364 = vst.msk [vmem:[#allocation2 + $0x1a0] sm:$0xff] %vm311, 0.0
          %365 = vst.msk [vmem:[#allocation2 + $0x1a8] sm:$0xff] %vm311, 0.0
          %366 = vst.msk [vmem:[#allocation2 + $0x1b0] sm:$0xff] %vm311, 0.0
          %367 = vst.msk [vmem:[#allocation2 + $0x1b8] sm:$0xff] %vm311, 0.0
          %368 = vst.msk [vmem:[#allocation2 + $0x1c0] sm:$0xff] %vm311, 0.0
          %369 = vst.msk [vmem:[#allocation2 + $0x1c8] sm:$0xff] %vm311, 0.0
          %370 = vst.msk [vmem:[#allocation2 + $0x1d0] sm:$0xff] %vm311, 0.0
          %371 = vst.msk [vmem:[#allocation2 + $0x1d8] sm:$0xff] %vm311, 0.0
          %372 = vst.msk [vmem:[#allocation2 + $0x1e0] sm:$0xff] %vm311, 0.0
          %373 = vst.msk [vmem:[#allocation2 + $0x1e8] sm:$0xff] %vm311, 0.0
          %374 = vst.msk [vmem:[#allocation2 + $0x1f0] sm:$0xff] %vm311, 0.0
          %375 = vst.msk [vmem:[#allocation2 + $0x1f8] sm:$0xff] %vm311, 0.0
        $region36: #{tpu_custom_call.1} parent=27 // pred_fallthru
          _
        %v376 = vld [vmem:[#allocation2] sm:$0xff]
        %v377 = vld [vmem:[#allocation2 + $0x8] sm:$0xff]
        %v378 = vld [vmem:[#allocation2 + $0x10] sm:$0xff]
        %v379 = vld [vmem:[#allocation2 + $0x18] sm:$0xff]
        %v380 = vld [vmem:[#allocation2 + $0x20] sm:$0xff]
        %v381 = vld [vmem:[#allocation2 + $0x28] sm:$0xff]
        %v382 = vld [vmem:[#allocation2 + $0x30] sm:$0xff]
        %v383 = vld [vmem:[#allocation2 + $0x38] sm:$0xff]
        %v384 = vld [vmem:[#allocation2 + $0x40] sm:$0xff]
        %v385 = vld [vmem:[#allocation2 + $0x48] sm:$0xff]
        %v386 = vld [vmem:[#allocation2 + $0x50] sm:$0xff]
        %v387 = vld [vmem:[#allocation2 + $0x58] sm:$0xff]
        %v388 = vld [vmem:[#allocation2 + $0x60] sm:$0xff]
        %v389 = vld [vmem:[#allocation2 + $0x68] sm:$0xff]
        %v390 = vld [vmem:[#allocation2 + $0x70] sm:$0xff]
        %v391 = vld [vmem:[#allocation2 + $0x78] sm:$0xff]
        %v392 = vld [vmem:[#allocation2 + $0x80] sm:$0xff]
        %v393 = vld [vmem:[#allocation2 + $0x88] sm:$0xff]
        %v394 = vld [vmem:[#allocation2 + $0x90] sm:$0xff]
        %v395 = vld [vmem:[#allocation2 + $0x98] sm:$0xff]
        %v396 = vld [vmem:[#allocation2 + $0xa0] sm:$0xff]
        %v397 = vld [vmem:[#allocation2 + $0xa8] sm:$0xff]
        %v398 = vld [vmem:[#allocation2 + $0xb0] sm:$0xff]
        %v399 = vld [vmem:[#allocation2 + $0xb8] sm:$0xff]
        %v400 = vld [vmem:[#allocation2 + $0xc0] sm:$0xff]
        %v401 = vld [vmem:[#allocation2 + $0xc8] sm:$0xff]
        %v402 = vld [vmem:[#allocation2 + $0xd0] sm:$0xff]
        %v403 = vld [vmem:[#allocation2 + $0xd8] sm:$0xff]
        %v404 = vld [vmem:[#allocation2 + $0xe0] sm:$0xff]
        %v405 = vld [vmem:[#allocation2 + $0xe8] sm:$0xff]
        %v406 = vld [vmem:[#allocation2 + $0xf0] sm:$0xff]
        %v407 = vld [vmem:[#allocation2 + $0xf8] sm:$0xff]
        %v408 = vld [vmem:[#allocation2 + $0x100] sm:$0xff]
        %v409 = vld [vmem:[#allocation2 + $0x108] sm:$0xff]
        %v410 = vld [vmem:[#allocation2 + $0x110] sm:$0xff]
        %v411 = vld [vmem:[#allocation2 + $0x118] sm:$0xff]
        %v412 = vld [vmem:[#allocation2 + $0x120] sm:$0xff]
        %v413 = vld [vmem:[#allocation2 + $0x128] sm:$0xff]
        %v414 = vld [vmem:[#allocation2 + $0x130] sm:$0xff]
        %v415 = vld [vmem:[#allocation2 + $0x138] sm:$0xff]
        %v416 = vld [vmem:[#allocation2 + $0x140] sm:$0xff]
        %v417 = vld [vmem:[#allocation2 + $0x148] sm:$0xff]
        %v418 = vld [vmem:[#allocation2 + $0x150] sm:$0xff]
        %v419 = vld [vmem:[#allocation2 + $0x158] sm:$0xff]
        %v420 = vld [vmem:[#allocation2 + $0x160] sm:$0xff]
        %v421 = vld [vmem:[#allocation2 + $0x168] sm:$0xff]
        %v422 = vld [vmem:[#allocation2 + $0x170] sm:$0xff]
        %v423 = vld [vmem:[#allocation2 + $0x178] sm:$0xff]
        %v424 = vld [vmem:[#allocation2 + $0x180] sm:$0xff]
        %v425 = vld [vmem:[#allocation2 + $0x188] sm:$0xff]
        %v426 = vld [vmem:[#allocation2 + $0x190] sm:$0xff]
        %v427 = vld [vmem:[#allocation2 + $0x198] sm:$0xff]
        %v428 = vld [vmem:[#allocation2 + $0x1a0] sm:$0xff]
        %v429 = vld [vmem:[#allocation2 + $0x1a8] sm:$0xff]
        %v430 = vld [vmem:[#allocation2 + $0x1b0] sm:$0xff]
        %v431 = vld [vmem:[#allocation2 + $0x1b8] sm:$0xff]
        %v432 = vld [vmem:[#allocation2 + $0x1c0] sm:$0xff]
        %v433 = vld [vmem:[#allocation2 + $0x1c8] sm:$0xff]
        %v434 = vld [vmem:[#allocation2 + $0x1d0] sm:$0xff]
        %v435 = vld [vmem:[#allocation2 + $0x1d8] sm:$0xff]
        %v436 = vld [vmem:[#allocation2 + $0x1e0] sm:$0xff]
        %v437 = vld [vmem:[#allocation2 + $0x1e8] sm:$0xff]
        %v438 = vld [vmem:[#allocation2 + $0x1f0] sm:$0xff]
        %v439 = vld [vmem:[#allocation2 + $0x1f8] sm:$0xff]
        %v440 = vld [vmem:[%s243] sm:$0xf]
        %v441 = vld [vmem:[%s243 + $0x4] sm:$0xf]
        %v442 = vld [vmem:[%s243 + $0x8] sm:$0xf]
        %v443 = vld [vmem:[%s243 + $0xc] sm:$0xf]
        %v444 = vld [vmem:[%s243 + $0x10] sm:$0xf]
        %v445 = vld [vmem:[%s243 + $0x14] sm:$0xf]
        %v446 = vld [vmem:[%s243 + $0x18] sm:$0xf]
        %v447 = vld [vmem:[%s243 + $0x1c] sm:$0xf]
        %v448 = vld [vmem:[%s243 + $0x20] sm:$0xf]
        %v449 = vld [vmem:[%s243 + $0x24] sm:$0xf]
        %v450 = vld [vmem:[%s243 + $0x28] sm:$0xf]
        %v451 = vld [vmem:[%s243 + $0x2c] sm:$0xf]
        %v452 = vld [vmem:[%s243 + $0x30] sm:$0xf]
        %v453 = vld [vmem:[%s243 + $0x34] sm:$0xf]
        %v454 = vld [vmem:[%s243 + $0x38] sm:$0xf]
        %v455 = vld [vmem:[%s243 + $0x3c] sm:$0xf]
        %v456 = vld [vmem:[%s243 + $0x40] sm:$0xf]
        %v457 = vld [vmem:[%s243 + $0x44] sm:$0xf]
        %v458 = vld [vmem:[%s243 + $0x48] sm:$0xf]
        %v459 = vld [vmem:[%s243 + $0x4c] sm:$0xf]
        %v460 = vld [vmem:[%s243 + $0x50] sm:$0xf]
        %v461 = vld [vmem:[%s243 + $0x54] sm:$0xf]
        %v462 = vld [vmem:[%s243 + $0x58] sm:$0xf]
        %v463 = vld [vmem:[%s243 + $0x5c] sm:$0xf]
        %v464 = vld [vmem:[%s243 + $0x60] sm:$0xf]
        %v465 = vld [vmem:[%s243 + $0x64] sm:$0xf]
        %v466 = vld [vmem:[%s243 + $0x68] sm:$0xf]
        %v467 = vld [vmem:[%s243 + $0x6c] sm:$0xf]
        %v468 = vld [vmem:[%s243 + $0x70] sm:$0xf]
        %v469 = vld [vmem:[%s243 + $0x74] sm:$0xf]
        %v470 = vld [vmem:[%s243 + $0x78] sm:$0xf]
        %v471 = vld [vmem:[%s243 + $0x7c] sm:$0xf]
        %v472 = vld [vmem:[%s243 + $0x80] sm:$0xf]
        %v473 = vld [vmem:[%s243 + $0x84] sm:$0xf]
        %v474 = vld [vmem:[%s243 + $0x88] sm:$0xf]
        %v475 = vld [vmem:[%s243 + $0x8c] sm:$0xf]
        %v476 = vld [vmem:[%s243 + $0x90] sm:$0xf]
        %v477 = vld [vmem:[%s243 + $0x94] sm:$0xf]
        %v478 = vld [vmem:[%s243 + $0x98] sm:$0xf]
        %v479 = vld [vmem:[%s243 + $0x9c] sm:$0xf]
        %v480 = vld [vmem:[%s243 + $0xa0] sm:$0xf]
        %v481 = vld [vmem:[%s243 + $0xa4] sm:$0xf]
        %v482 = vld [vmem:[%s243 + $0xa8] sm:$0xf]
        %v483 = vld [vmem:[%s243 + $0xac] sm:$0xf]
        %v484 = vld [vmem:[%s243 + $0xb0] sm:$0xf]
        %v485 = vld [vmem:[%s243 + $0xb4] sm:$0xf]
        %v486 = vld [vmem:[%s243 + $0xb8] sm:$0xf]
        %v487 = vld [vmem:[%s243 + $0xbc] sm:$0xf]
        %v488 = vld [vmem:[%s243 + $0xc0] sm:$0xf]
        %v489 = vld [vmem:[%s243 + $0xc4] sm:$0xf]
        %v490 = vld [vmem:[%s243 + $0xc8] sm:$0xf]
        %v491 = vld [vmem:[%s243 + $0xcc] sm:$0xf]
        %v492 = vld [vmem:[%s243 + $0xd0] sm:$0xf]
        %v493 = vld [vmem:[%s243 + $0xd4] sm:$0xf]
        %v494 = vld [vmem:[%s243 + $0xd8] sm:$0xf]
        %v495 = vld [vmem:[%s243 + $0xdc] sm:$0xf]
        %v496 = vld [vmem:[%s243 + $0xe0] sm:$0xf]
        %v497 = vld [vmem:[%s243 + $0xe4] sm:$0xf]
        %v498 = vld [vmem:[%s243 + $0xe8] sm:$0xf]
        %v499 = vld [vmem:[%s243 + $0xec] sm:$0xf]
        %v500 = vld [vmem:[%s243 + $0xf0] sm:$0xf]
        %v501 = vld [vmem:[%s243 + $0xf4] sm:$0xf]
        %v502 = vld [vmem:[%s243 + $0xf8] sm:$0xf]
        %v503 = vld [vmem:[%s243 + $0xfc] sm:$0xf]
        %v504 = vld [vmem:[%s295] sm:$0xf]
        %v505 = vld [vmem:[%s295 + $0x4] sm:$0xf]
        %v506 = vld [vmem:[%s295 + $0x8] sm:$0xf]
        %v507 = vld [vmem:[%s295 + $0xc] sm:$0xf]
        %v508 = vld [vmem:[%s295 + $0x10] sm:$0xf]
        %v509 = vld [vmem:[%s295 + $0x14] sm:$0xf]
        %v510 = vld [vmem:[%s295 + $0x18] sm:$0xf]
        %v511 = vld [vmem:[%s295 + $0x1c] sm:$0xf]
        %v512 = vld [vmem:[%s295 + $0x20] sm:$0xf]
        %v513 = vld [vmem:[%s295 + $0x24] sm:$0xf]
        %v514 = vld [vmem:[%s295 + $0x28] sm:$0xf]
        %v515 = vld [vmem:[%s295 + $0x2c] sm:$0xf]
        %v516 = vld [vmem:[%s295 + $0x30] sm:$0xf]
        %v517 = vld [vmem:[%s295 + $0x34] sm:$0xf]
        %v518 = vld [vmem:[%s295 + $0x38] sm:$0xf]
        %v519 = vld [vmem:[%s295 + $0x3c] sm:$0xf]
        %v584 = vunpack.c.l.b16 %v440
        %v585 = vunpack.c.l.b16 %v441
        %v586 = vunpack.c.l.b16 %v442
        %v587 = vunpack.c.l.b16 %v443
        %v588 = vunpack.c.l.b16 %v444
        %v589 = vunpack.c.l.b16 %v445
        %v590 = vunpack.c.l.b16 %v446
        %v591 = vunpack.c.l.b16 %v447
        %v592 = vunpack.c.l.b16 %v448
        %v593 = vunpack.c.l.b16 %v449
        %v594 = vunpack.c.l.b16 %v450
        %v595 = vunpack.c.l.b16 %v451
        %v596 = vunpack.c.l.b16 %v452
        %v597 = vunpack.c.l.b16 %v453
        %v598 = vunpack.c.l.b16 %v454
        %v599 = vunpack.c.l.b16 %v455
        %v600 = vunpack.c.l.b16 %v456
        %v601 = vunpack.c.l.b16 %v457
        %v602 = vunpack.c.l.b16 %v458
        %v603 = vunpack.c.l.b16 %v459
        %v604 = vunpack.c.l.b16 %v460
        %v605 = vunpack.c.l.b16 %v461
        %v606 = vunpack.c.l.b16 %v462
        %v607 = vunpack.c.l.b16 %v463
        %v608 = vunpack.c.l.b16 %v464
        %v609 = vunpack.c.l.b16 %v465
        %v610 = vunpack.c.l.b16 %v466
        %v611 = vunpack.c.l.b16 %v467
        %v612 = vunpack.c.l.b16 %v468
        %v613 = vunpack.c.l.b16 %v469
        %v614 = vunpack.c.l.b16 %v470
        %v615 = vunpack.c.l.b16 %v471
        %v616 = vunpack.c.l.b16 %v472
        %v617 = vunpack.c.l.b16 %v473
        %v618 = vunpack.c.l.b16 %v474
        %v619 = vunpack.c.l.b16 %v475
        %v620 = vunpack.c.l.b16 %v476
        %v621 = vunpack.c.l.b16 %v477
        %v622 = vunpack.c.l.b16 %v478
        %v623 = vunpack.c.l.b16 %v479
        %v624 = vunpack.c.l.b16 %v480
        %v625 = vunpack.c.l.b16 %v481
        %v626 = vunpack.c.l.b16 %v482
        %v627 = vunpack.c.l.b16 %v483
        %v628 = vunpack.c.l.b16 %v484
        %v629 = vunpack.c.l.b16 %v485
        %v630 = vunpack.c.l.b16 %v486
        %v631 = vunpack.c.l.b16 %v487
        %v632 = vunpack.c.l.b16 %v488
        %v633 = vunpack.c.l.b16 %v489
        %v634 = vunpack.c.l.b16 %v490
        %v635 = vunpack.c.l.b16 %v491
        %v636 = vunpack.c.l.b16 %v492
        %v637 = vunpack.c.l.b16 %v493
        %v638 = vunpack.c.l.b16 %v494
        %v639 = vunpack.c.l.b16 %v495
        %v640 = vunpack.c.l.b16 %v496
        %v641 = vunpack.c.l.b16 %v497
        %v642 = vunpack.c.l.b16 %v498
        %v643 = vunpack.c.l.b16 %v499
        %v644 = vunpack.c.l.b16 %v500
        %v645 = vunpack.c.l.b16 %v501
        %v646 = vunpack.c.l.b16 %v502
        %v647 = vunpack.c.l.b16 %v503
        %v648 = vpack.c.b16 %v585, %v584
        %v649 = vpack.c.b16 %v587, %v586
        %v650 = vpack.c.b16 %v589, %v588
        %v651 = vpack.c.b16 %v591, %v590
        %v652 = vpack.c.b16 %v593, %v592
        %v653 = vpack.c.b16 %v595, %v594
        %v654 = vpack.c.b16 %v597, %v596
        %v655 = vpack.c.b16 %v599, %v598
        %v656 = vpack.c.b16 %v601, %v600
        %v657 = vpack.c.b16 %v603, %v602
        %v658 = vpack.c.b16 %v605, %v604
        %v659 = vpack.c.b16 %v607, %v606
        %v660 = vpack.c.b16 %v609, %v608
        %v661 = vpack.c.b16 %v611, %v610
        %v662 = vpack.c.b16 %v613, %v612
        %v663 = vpack.c.b16 %v615, %v614
        %v664 = vpack.c.b16 %v617, %v616
        %v665 = vpack.c.b16 %v619, %v618
        %v666 = vpack.c.b16 %v621, %v620
        %v667 = vpack.c.b16 %v623, %v622
        %v668 = vpack.c.b16 %v625, %v624
        %v669 = vpack.c.b16 %v627, %v626
        %v670 = vpack.c.b16 %v629, %v628
        %v671 = vpack.c.b16 %v631, %v630
        %v672 = vpack.c.b16 %v633, %v632
        %v673 = vpack.c.b16 %v635, %v634
        %v674 = vpack.c.b16 %v637, %v636
        %v675 = vpack.c.b16 %v639, %v638
        %v676 = vpack.c.b16 %v641, %v640
        %v677 = vpack.c.b16 %v643, %v642
        %v678 = vpack.c.b16 %v645, %v644
        %v679 = vpack.c.b16 %v647, %v646
        %v728 = vunpack.c.l.b16 %v504
        %v729 = vunpack.c.l.b16 %v505
        %v730 = vunpack.c.l.b16 %v506
        %v731 = vunpack.c.l.b16 %v507
        %v732 = vunpack.c.l.b16 %v508
        %v733 = vunpack.c.l.b16 %v509
        %v734 = vunpack.c.l.b16 %v510
        %v735 = vunpack.c.l.b16 %v511
        %v736 = vunpack.c.l.b16 %v512
        %v737 = vunpack.c.l.b16 %v513
        %v738 = vunpack.c.l.b16 %v514
        %v739 = vunpack.c.l.b16 %v515
        %v740 = vunpack.c.l.b16 %v516
        %v741 = vunpack.c.l.b16 %v517
        %v742 = vunpack.c.l.b16 %v518
        %v743 = vunpack.c.l.b16 %v519
        %v744 = vpack.c.b16 %v729, %v728
        %v745 = vpack.c.b16 %v731, %v730
        %v746 = vpack.c.b16 %v733, %v732
        %v747 = vpack.c.b16 %v735, %v734
        %v748 = vpack.c.b16 %v737, %v736
        %v749 = vpack.c.b16 %v739, %v738
        %v750 = vpack.c.b16 %v741, %v740
        %v751 = vpack.c.b16 %v743, %v742
        %760 = vmatprep.subr.bf16.mxu0 0
        %761 = vmatpush1.bf16.msra.mxu0 %v744
        %762 = vmatprep.subr.bf16.mxu0 0
        %763 = vmatpush1.bf16.msra.mxu0 %v745
        %764 = vmatprep.subr.bf16.mxu0 0
        %765 = vmatpush1.bf16.msra.mxu0 %v746
        %766 = vmatprep.subr.bf16.mxu0 0
        %767 = vmatpush1.bf16.msra.mxu0 %v747
        %768 = vmatprep.subr.bf16.mxu0 0
        %769 = vmatpush1.bf16.msra.mxu0 %v748
        %770 = vmatprep.subr.bf16.mxu0 0
        %771 = vmatpush1.bf16.msra.mxu0 %v749
        %772 = vmatprep.subr.bf16.mxu0 0
        %773 = vmatpush1.bf16.msra.mxu0 %v750
        %774 = vmatprep.subr.bf16.mxu0 0
        %775 = vmatpush1.bf16.msra.mxu0 %v751
        %776 = vmatprep.subr.bf16.mxu0 0
        %777 = vmatpush1.bf16.msra.mxu0 0
        %778 = vmatprep.subr.bf16.mxu0 0
        %779 = vmatpush1.bf16.msra.mxu0 0
        %780 = vmatprep.subr.bf16.mxu0 0
        %781 = vmatpush1.bf16.msra.mxu0 0
        %782 = vmatprep.subr.bf16.mxu0 0
        %783 = vmatpush1.bf16.msra.mxu0 0
        %784 = vmatprep.subr.bf16.mxu0 0
        %785 = vmatpush1.bf16.msra.mxu0 0
        %786 = vmatprep.subr.bf16.mxu0 0
        %787 = vmatpush1.bf16.msra.mxu0 0
        %788 = vmatprep.subr.bf16.mxu0 0
        %789 = vmatpush1.bf16.msra.mxu0 0
        %790 = vmatprep.subr.bf16.mxu0 0
        %791 = vmatpush1.bf16.msra.mxu0 0
        %792 = vmatprep.mubr.bf16.mxu0 0
        %793 = vmatmul.mubr.bf16.gmra.mrb[0].mxu0 %v648
        %v794 = vpop.f32.mrb[0].mxu0
        %v795 = vadd.f32 0.0, %v794
        %v796 = vpop.f32.mrb[0].mxu0
        %v797 = vpop.f32.mrb[0].mxu0
        %v798 = vadd.f32 0.0, %v797
        %v799 = vpop.f32.mrb[0].mxu0
        %800 = vmatprep.mubr.bf16.mxu0 0
        %801 = vmatmul.mubr.bf16.gmra.mrb[0].mxu0 %v649
        %v802 = vpop.f32.mrb[0].mxu0
        %v803 = vadd.f32 0.0, %v802
        %v804 = vpop.f32.mrb[0].mxu0
        %v805 = vpop.f32.mrb[0].mxu0
        %v806 = vadd.f32 0.0, %v805
        %v807 = vpop.f32.mrb[0].mxu0
        %808 = vmatprep.mubr.bf16.mxu0 0
        %809 = vmatmul.mubr.bf16.gmra.mrb[0].mxu0 %v650
        %v810 = vpop.f32.mrb[0].mxu0
        %v811 = vadd.f32 0.0, %v810
        %v812 = vpop.f32.mrb[0].mxu0
        %v813 = vpop.f32.mrb[0].mxu0
        %v814 = vadd.f32 0.0, %v813
        %v815 = vpop.f32.mrb[0].mxu0
        %816 = vmatprep.mubr.bf16.mxu0 0
        %817 = vmatmul.mubr.bf16.gmra.mrb[0].mxu0 %v651
        %v818 = vpop.f32.mrb[0].mxu0
        %v819 = vadd.f32 0.0, %v818
        %v820 = vpop.f32.mrb[0].mxu0
        %v821 = vpop.f32.mrb[0].mxu0
        %v822 = vadd.f32 0.0, %v821
        %v823 = vpop.f32.mrb[0].mxu0
        %824 = vmatprep.mubr.bf16.mxu0 0
        %825 = vmatmul.mubr.bf16.gmra.mrb[0].mxu0 %v652
        %v826 = vpop.f32.mrb[0].mxu0
        %v827 = vadd.f32 0.0, %v826
        %v828 = vpop.f32.mrb[0].mxu0
        %v829 = vpop.f32.mrb[0].mxu0
        %v830 = vadd.f32 0.0, %v829
        %v831 = vpop.f32.mrb[0].mxu0
        %832 = vmatprep.mubr.bf16.mxu0 0
        %833 = vmatmul.mubr.bf16.gmra.mrb[0].mxu0 %v653
        %v834 = vpop.f32.mrb[0].mxu0
        %v835 = vadd.f32 0.0, %v834
        %v836 = vpop.f32.mrb[0].mxu0
        %v837 = vpop.f32.mrb[0].mxu0
        %v838 = vadd.f32 0.0, %v837
        %v839 = vpop.f32.mrb[0].mxu0
        %840 = vmatprep.mubr.bf16.mxu0 0
        %841 = vmatmul.mubr.bf16.gmra.mrb[0].mxu0 %v654
        %v842 = vpop.f32.mrb[0].mxu0
        %v843 = vadd.f32 0.0, %v842
        %v844 = vpop.f32.mrb[0].mxu0
        %v845 = vpop.f32.mrb[0].mxu0
        %v846 = vadd.f32 0.0, %v845
        %v847 = vpop.f32.mrb[0].mxu0
        %848 = vmatprep.mubr.bf16.mxu0 0
        %849 = vmatmul.mubr.bf16.gmra.mrb[0].mxu0 %v655
        %v850 = vpop.f32.mrb[0].mxu0
        %v851 = vadd.f32 0.0, %v850
        %v852 = vpop.f32.mrb[0].mxu0
        %v853 = vpop.f32.mrb[0].mxu0
        %v854 = vadd.f32 0.0, %v853
        %v855 = vpop.f32.mrb[0].mxu0
        %856 = vmatprep.mubr.bf16.mxu0 0
        %857 = vmatmul.mubr.bf16.gmra.mrb[0].mxu0 %v656
        %v858 = vpop.f32.mrb[0].mxu0
        %v859 = vadd.f32 0.0, %v858
        %v860 = vpop.f32.mrb[0].mxu0
        %v861 = vpop.f32.mrb[0].mxu0
        %v862 = vadd.f32 0.0, %v861
        %v863 = vpop.f32.mrb[0].mxu0
        %864 = vmatprep.mubr.bf16.mxu0 0
        %865 = vmatmul.mubr.bf16.gmra.mrb[0].mxu0 %v657
        %v866 = vpop.f32.mrb[0].mxu0
        %v867 = vadd.f32 0.0, %v866
        %v868 = vpop.f32.mrb[0].mxu0
        %v869 = vpop.f32.mrb[0].mxu0
        %v870 = vadd.f32 0.0, %v869
        %v871 = vpop.f32.mrb[0].mxu0
        %872 = vmatprep.mubr.bf16.mxu0 0
        %873 = vmatmul.mubr.bf16.gmra.mrb[0].mxu0 %v658
        %v874 = vpop.f32.mrb[0].mxu0
        %v875 = vadd.f32 0.0, %v874
        %v876 = vpop.f32.mrb[0].mxu0
        %v877 = vpop.f32.mrb[0].mxu0
        %v878 = vadd.f32 0.0, %v877
        %v879 = vpop.f32.mrb[0].mxu0
        %880 = vmatprep.mubr.bf16.mxu0 0
        %881 = vmatmul.mubr.bf16.gmra.mrb[0].mxu0 %v659
        %v882 = vpop.f32.mrb[0].mxu0
        %v883 = vadd.f32 0.0, %v882
        %v884 = vpop.f32.mrb[0].mxu0
        %v885 = vpop.f32.mrb[0].mxu0
        %v886 = vadd.f32 0.0, %v885
        %v887 = vpop.f32.mrb[0].mxu0
        %888 = vmatprep.mubr.bf16.mxu0 0
        %889 = vmatmul.mubr.bf16.gmra.mrb[0].mxu0 %v660
        %v890 = vpop.f32.mrb[0].mxu0
        %v891 = vadd.f32 0.0, %v890
        %v892 = vpop.f32.mrb[0].mxu0
        %v893 = vpop.f32.mrb[0].mxu0
        %v894 = vadd.f32 0.0, %v893
        %v895 = vpop.f32.mrb[0].mxu0
        %896 = vmatprep.mubr.bf16.mxu0 0
        %897 = vmatmul.mubr.bf16.gmra.mrb[0].mxu0 %v661
        %v898 = vpop.f32.mrb[0].mxu0
        %v899 = vadd.f32 0.0, %v898
        %v900 = vpop.f32.mrb[0].mxu0
        %v901 = vpop.f32.mrb[0].mxu0
        %v902 = vadd.f32 0.0, %v901
        %v903 = vpop.f32.mrb[0].mxu0
        %904 = vmatprep.mubr.bf16.mxu0 0
        %905 = vmatmul.mubr.bf16.gmra.mrb[0].mxu0 %v662
        %v906 = vpop.f32.mrb[0].mxu0
        %v907 = vadd.f32 0.0, %v906
        %v908 = vpop.f32.mrb[0].mxu0
        %v909 = vpop.f32.mrb[0].mxu0
        %v910 = vadd.f32 0.0, %v909
        %v911 = vpop.f32.mrb[0].mxu0
        %912 = vmatprep.mubr.bf16.mxu0 0
        %913 = vmatmul.mubr.bf16.gmra.mrb[0].mxu0 %v663
        %v914 = vpop.f32.mrb[0].mxu0
        %v915 = vadd.f32 0.0, %v914
        %v916 = vpop.f32.mrb[0].mxu0
        %v917 = vpop.f32.mrb[0].mxu0
        %v918 = vadd.f32 0.0, %v917
        %v919 = vpop.f32.mrb[0].mxu0
        %920 = vmatprep.mubr.bf16.mxu0 0
        %921 = vmatmul.mubr.bf16.gmra.mrb[0].mxu0 %v664
        %v922 = vpop.f32.mrb[0].mxu0
        %v923 = vadd.f32 0.0, %v922
        %v924 = vpop.f32.mrb[0].mxu0
        %v925 = vpop.f32.mrb[0].mxu0
        %v926 = vadd.f32 0.0, %v925
        %v927 = vpop.f32.mrb[0].mxu0
        %928 = vmatprep.mubr.bf16.mxu0 0
        %929 = vmatmul.mubr.bf16.gmra.mrb[0].mxu0 %v665
        %v930 = vpop.f32.mrb[0].mxu0
        %v931 = vadd.f32 0.0, %v930
        %v932 = vpop.f32.mrb[0].mxu0
        %v933 = vpop.f32.mrb[0].mxu0
        %v934 = vadd.f32 0.0, %v933
        %v935 = vpop.f32.mrb[0].mxu0
        %936 = vmatprep.mubr.bf16.mxu0 0
        %937 = vmatmul.mubr.bf16.gmra.mrb[0].mxu0 %v666
        %v938 = vpop.f32.mrb[0].mxu0
        %v939 = vadd.f32 0.0, %v938
        %v940 = vpop.f32.mrb[0].mxu0
        %v941 = vpop.f32.mrb[0].mxu0
        %v942 = vadd.f32 0.0, %v941
        %v943 = vpop.f32.mrb[0].mxu0
        %944 = vmatprep.mubr.bf16.mxu0 0
        %945 = vmatmul.mubr.bf16.gmra.mrb[0].mxu0 %v667
        %v946 = vpop.f32.mrb[0].mxu0
        %v947 = vadd.f32 0.0, %v946
        %v948 = vpop.f32.mrb[0].mxu0
        %v949 = vpop.f32.mrb[0].mxu0
        %v950 = vadd.f32 0.0, %v949
        %v951 = vpop.f32.mrb[0].mxu0
        %952 = vmatprep.mubr.bf16.mxu0 0
        %953 = vmatmul.mubr.bf16.gmra.mrb[0].mxu0 %v668
        %v954 = vpop.f32.mrb[0].mxu0
        %v955 = vadd.f32 0.0, %v954
        %v956 = vpop.f32.mrb[0].mxu0
        %v957 = vpop.f32.mrb[0].mxu0
        %v958 = vadd.f32 0.0, %v957
        %v959 = vpop.f32.mrb[0].mxu0
        %960 = vmatprep.mubr.bf16.mxu0 0
        %961 = vmatmul.mubr.bf16.gmra.mrb[0].mxu0 %v669
        %v962 = vpop.f32.mrb[0].mxu0
        %v963 = vadd.f32 0.0, %v962
        %v964 = vpop.f32.mrb[0].mxu0
        %v965 = vpop.f32.mrb[0].mxu0
        %v966 = vadd.f32 0.0, %v965
        %v967 = vpop.f32.mrb[0].mxu0
        %968 = vmatprep.mubr.bf16.mxu0 0
        %969 = vmatmul.mubr.bf16.gmra.mrb[0].mxu0 %v670
        %v970 = vpop.f32.mrb[0].mxu0
        %v971 = vadd.f32 0.0, %v970
        %v972 = vpop.f32.mrb[0].mxu0
        %v973 = vpop.f32.mrb[0].mxu0
        %v974 = vadd.f32 0.0, %v973
        %v975 = vpop.f32.mrb[0].mxu0
        %976 = vmatprep.mubr.bf16.mxu0 0
        %977 = vmatmul.mubr.bf16.gmra.mrb[0].mxu0 %v671
        %v978 = vpop.f32.mrb[0].mxu0
        %v979 = vadd.f32 0.0, %v978
        %v980 = vpop.f32.mrb[0].mxu0
        %v981 = vpop.f32.mrb[0].mxu0
        %v982 = vadd.f32 0.0, %v981
        %v983 = vpop.f32.mrb[0].mxu0
        %984 = vmatprep.mubr.bf16.mxu0 0
        %985 = vmatmul.mubr.bf16.gmra.mrb[0].mxu0 %v672
        %v986 = vpop.f32.mrb[0].mxu0
        %v987 = vadd.f32 0.0, %v986
        %v988 = vpop.f32.mrb[0].mxu0
        %v989 = vpop.f32.mrb[0].mxu0
        %v990 = vadd.f32 0.0, %v989
        %v991 = vpop.f32.mrb[0].mxu0
        %992 = vmatprep.mubr.bf16.mxu0 0
        %993 = vmatmul.mubr.bf16.gmra.mrb[0].mxu0 %v673
        %v994 = vpop.f32.mrb[0].mxu0
        %v995 = vadd.f32 0.0, %v994
        %v996 = vpop.f32.mrb[0].mxu0
        %v997 = vpop.f32.mrb[0].mxu0
        %v998 = vadd.f32 0.0, %v997
        %v999 = vpop.f32.mrb[0].mxu0
        %1000 = vmatprep.mubr.bf16.mxu0 0
        %1001 = vmatmul.mubr.bf16.gmra.mrb[0].mxu0 %v674
        %v1002 = vpop.f32.mrb[0].mxu0
        %v1003 = vadd.f32 0.0, %v1002
        %v1004 = vpop.f32.mrb[0].mxu0
        %v1005 = vpop.f32.mrb[0].mxu0
        %v1006 = vadd.f32 0.0, %v1005
        %v1007 = vpop.f32.mrb[0].mxu0
        %1008 = vmatprep.mubr.bf16.mxu0 0
        %1009 = vmatmul.mubr.bf16.gmra.mrb[0].mxu0 %v675
        %v1010 = vpop.f32.mrb[0].mxu0
        %v1011 = vadd.f32 0.0, %v1010
        %v1012 = vpop.f32.mrb[0].mxu0
        %v1013 = vpop.f32.mrb[0].mxu0
        %v1014 = vadd.f32 0.0, %v1013
        %v1015 = vpop.f32.mrb[0].mxu0
        %1016 = vmatprep.mubr.bf16.mxu0 0
        %1017 = vmatmul.mubr.bf16.gmra.mrb[0].mxu0 %v676
        %v1018 = vpop.f32.mrb[0].mxu0
        %v1019 = vadd.f32 0.0, %v1018
        %v1020 = vpop.f32.mrb[0].mxu0
        %v1021 = vpop.f32.mrb[0].mxu0
        %v1022 = vadd.f32 0.0, %v1021
        %v1023 = vpop.f32.mrb[0].mxu0
        %1024 = vmatprep.mubr.bf16.mxu0 0
        %1025 = vmatmul.mubr.bf16.gmra.mrb[0].mxu0 %v677
        %v1026 = vpop.f32.mrb[0].mxu0
        %v1027 = vadd.f32 0.0, %v1026
        %v1028 = vpop.f32.mrb[0].mxu0
        %v1029 = vpop.f32.mrb[0].mxu0
        %v1030 = vadd.f32 0.0, %v1029
        %v1031 = vpop.f32.mrb[0].mxu0
        %1032 = vmatprep.mubr.bf16.mxu0 0
        %1033 = vmatmul.mubr.bf16.gmra.mrb[0].mxu0 %v678
        %v1034 = vpop.f32.mrb[0].mxu0
        %v1035 = vadd.f32 0.0, %v1034
        %v1036 = vpop.f32.mrb[0].mxu0
        %v1037 = vpop.f32.mrb[0].mxu0
        %v1038 = vadd.f32 0.0, %v1037
        %v1039 = vpop.f32.mrb[0].mxu0
        %1040 = vmatprep.mubr.bf16.mxu0 0
        %1041 = vmatmul.mubr.bf16.gmra.mrb[0].mxu0 %v679
        %v1042 = vpop.f32.mrb[0].mxu0
        %v1043 = vadd.f32 0.0, %v1042
        %v1044 = vpop.f32.mrb[0].mxu0
        %v1045 = vpop.f32.mrb[0].mxu0
        %v1046 = vadd.f32 0.0, %v1045
        %v1047 = vpop.f32.mrb[0].mxu0
        %1048 = vdwg.mxu0
        %v1049 = vadd.f32 %v376, %v795
        %v1050 = vadd.f32 %v377, %v798
        %v1051 = vadd.f32 %v378, %v803
        %v1052 = vadd.f32 %v379, %v806
        %v1053 = vadd.f32 %v380, %v811
        %v1054 = vadd.f32 %v381, %v814
        %v1055 = vadd.f32 %v382, %v819
        %v1056 = vadd.f32 %v383, %v822
        %v1057 = vadd.f32 %v384, %v827
        %v1058 = vadd.f32 %v385, %v830
        %v1059 = vadd.f32 %v386, %v835
        %v1060 = vadd.f32 %v387, %v838
        %v1061 = vadd.f32 %v388, %v843
        %v1062 = vadd.f32 %v389, %v846
        %v1063 = vadd.f32 %v390, %v851
        %v1064 = vadd.f32 %v391, %v854
        %v1065 = vadd.f32 %v392, %v859
        %v1066 = vadd.f32 %v393, %v862
        %v1067 = vadd.f32 %v394, %v867
        %v1068 = vadd.f32 %v395, %v870
        %v1069 = vadd.f32 %v396, %v875
        %v1070 = vadd.f32 %v397, %v878
        %v1071 = vadd.f32 %v398, %v883
        %v1072 = vadd.f32 %v399, %v886
        %v1073 = vadd.f32 %v400, %v891
        %v1074 = vadd.f32 %v401, %v894
        %v1075 = vadd.f32 %v402, %v899
        %v1076 = vadd.f32 %v403, %v902
        %v1077 = vadd.f32 %v404, %v907
        %v1078 = vadd.f32 %v405, %v910
        %v1079 = vadd.f32 %v406, %v915
        %v1080 = vadd.f32 %v407, %v918
        %v1081 = vadd.f32 %v408, %v923
        %v1082 = vadd.f32 %v409, %v926
        %v1083 = vadd.f32 %v410, %v931
        %v1084 = vadd.f32 %v411, %v934
        %v1085 = vadd.f32 %v412, %v939
        %v1086 = vadd.f32 %v413, %v942
        %v1087 = vadd.f32 %v414, %v947
        %v1088 = vadd.f32 %v415, %v950
        %v1089 = vadd.f32 %v416, %v955
        %v1090 = vadd.f32 %v417, %v958
        %v1091 = vadd.f32 %v418, %v963
        %v1092 = vadd.f32 %v419, %v966
        %v1093 = vadd.f32 %v420, %v971
        %v1094 = vadd.f32 %v421, %v974
        %v1095 = vadd.f32 %v422, %v979
        %v1096 = vadd.f32 %v423, %v982
        %v1097 = vadd.f32 %v424, %v987
        %v1098 = vadd.f32 %v425, %v990
        %v1099 = vadd.f32 %v426, %v995
        %v1100 = vadd.f32 %v427, %v998
        %v1101 = vadd.f32 %v428, %v1003
        %v1102 = vadd.f32 %v429, %v1006
        %v1103 = vadd.f32 %v430, %v1011
        %v1104 = vadd.f32 %v431, %v1014
        %v1105 = vadd.f32 %v432, %v1019
        %v1106 = vadd.f32 %v433, %v1022
        %v1107 = vadd.f32 %v434, %v1027
        %v1108 = vadd.f32 %v435, %v1030
        %v1109 = vadd.f32 %v436, %v1035
        %v1110 = vadd.f32 %v437, %v1038
        %v1111 = vadd.f32 %v438, %v1043
        %v1112 = vadd.f32 %v439, %v1046
        %vm1113 = vcmask 523264
        %1114 = vst.msk [vmem:[#allocation2] sm:$0xff] %vm1113, %v1049
        %1115 = vst.msk [vmem:[#allocation2 + $0x8] sm:$0xff] %vm1113, %v1050
        %1116 = vst.msk [vmem:[#allocation2 + $0x10] sm:$0xff] %vm1113, %v1051
        %1117 = vst.msk [vmem:[#allocation2 + $0x18] sm:$0xff] %vm1113, %v1052
        %1118 = vst.msk [vmem:[#allocation2 + $0x20] sm:$0xff] %vm1113, %v1053
        %1119 = vst.msk [vmem:[#allocation2 + $0x28] sm:$0xff] %vm1113, %v1054
        %1120 = vst.msk [vmem:[#allocation2 + $0x30] sm:$0xff] %vm1113, %v1055
        %1121 = vst.msk [vmem:[#allocation2 + $0x38] sm:$0xff] %vm1113, %v1056
        %1122 = vst.msk [vmem:[#allocation2 + $0x40] sm:$0xff] %vm1113, %v1057
        %1123 = vst.msk [vmem:[#allocation2 + $0x48] sm:$0xff] %vm1113, %v1058
        %1124 = vst.msk [vmem:[#allocation2 + $0x50] sm:$0xff] %vm1113, %v1059
        %1125 = vst.msk [vmem:[#allocation2 + $0x58] sm:$0xff] %vm1113, %v1060
        %1126 = vst.msk [vmem:[#allocation2 + $0x60] sm:$0xff] %vm1113, %v1061
        %1127 = vst.msk [vmem:[#allocation2 + $0x68] sm:$0xff] %vm1113, %v1062
        %1128 = vst.msk [vmem:[#allocation2 + $0x70] sm:$0xff] %vm1113, %v1063
        %1129 = vst.msk [vmem:[#allocation2 + $0x78] sm:$0xff] %vm1113, %v1064
        %1130 = vst.msk [vmem:[#allocation2 + $0x80] sm:$0xff] %vm1113, %v1065
        %1131 = vst.msk [vmem:[#allocation2 + $0x88] sm:$0xff] %vm1113, %v1066
        %1132 = vst.msk [vmem:[#allocation2 + $0x90] sm:$0xff] %vm1113, %v1067
        %1133 = vst.msk [vmem:[#allocation2 + $0x98] sm:$0xff] %vm1113, %v1068
        %1134 = vst.msk [vmem:[#allocation2 + $0xa0] sm:$0xff] %vm1113, %v1069
        %1135 = vst.msk [vmem:[#allocation2 + $0xa8] sm:$0xff] %vm1113, %v1070
        %1136 = vst.msk [vmem:[#allocation2 + $0xb0] sm:$0xff] %vm1113, %v1071
        %1137 = vst.msk [vmem:[#allocation2 + $0xb8] sm:$0xff] %vm1113, %v1072
        %1138 = vst.msk [vmem:[#allocation2 + $0xc0] sm:$0xff] %vm1113, %v1073
        %1139 = vst.msk [vmem:[#allocation2 + $0xc8] sm:$0xff] %vm1113, %v1074
        %1140 = vst.msk [vmem:[#allocation2 + $0xd0] sm:$0xff] %vm1113, %v1075
        %1141 = vst.msk [vmem:[#allocation2 + $0xd8] sm:$0xff] %vm1113, %v1076
        %1142 = vst.msk [vmem:[#allocation2 + $0xe0] sm:$0xff] %vm1113, %v1077
        %1143 = vst.msk [vmem:[#allocation2 + $0xe8] sm:$0xff] %vm1113, %v1078
        %1144 = vst.msk [vmem:[#allocation2 + $0xf0] sm:$0xff] %vm1113, %v1079
        %1145 = vst.msk [vmem:[#allocation2 + $0xf8] sm:$0xff] %vm1113, %v1080
        %1146 = vst.msk [vmem:[#allocation2 + $0x100] sm:$0xff] %vm1113, %v1081
        %1147 = vst.msk [vmem:[#allocation2 + $0x108] sm:$0xff] %vm1113, %v1082
        %1148 = vst.msk [vmem:[#allocation2 + $0x110] sm:$0xff] %vm1113, %v1083
        %1149 = vst.msk [vmem:[#allocation2 + $0x118] sm:$0xff] %vm1113, %v1084
        %1150 = vst.msk [vmem:[#allocation2 + $0x120] sm:$0xff] %vm1113, %v1085
        %1151 = vst.msk [vmem:[#allocation2 + $0x128] sm:$0xff] %vm1113, %v1086
        %1152 = vst.msk [vmem:[#allocation2 + $0x130] sm:$0xff] %vm1113, %v1087
        %1153 = vst.msk [vmem:[#allocation2 + $0x138] sm:$0xff] %vm1113, %v1088
        %1154 = vst.msk [vmem:[#allocation2 + $0x140] sm:$0xff] %vm1113, %v1089
        %1155 = vst.msk [vmem:[#allocation2 + $0x148] sm:$0xff] %vm1113, %v1090
        %1156 = vst.msk [vmem:[#allocation2 + $0x150] sm:$0xff] %vm1113, %v1091
        %1157 = vst.msk [vmem:[#allocation2 + $0x158] sm:$0xff] %vm1113, %v1092
        %1158 = vst.msk [vmem:[#allocation2 + $0x160] sm:$0xff] %vm1113, %v1093
        %1159 = vst.msk [vmem:[#allocation2 + $0x168] sm:$0xff] %vm1113, %v1094
        %1160 = vst.msk [vmem:[#allocation2 + $0x170] sm:$0xff] %vm1113, %v1095
        %1161 = vst.msk [vmem:[#allocation2 + $0x178] sm:$0xff] %vm1113, %v1096
        %1162 = vst.msk [vmem:[#allocation2 + $0x180] sm:$0xff] %vm1113, %v1097
        %1163 = vst.msk [vmem:[#allocation2 + $0x188] sm:$0xff] %vm1113, %v1098
        %1164 = vst.msk [vmem:[#allocation2 + $0x190] sm:$0xff] %vm1113, %v1099
        %1165 = vst.msk [vmem:[#allocation2 + $0x198] sm:$0xff] %vm1113, %v1100
        %1166 = vst.msk [vmem:[#allocation2 + $0x1a0] sm:$0xff] %vm1113, %v1101
        %1167 = vst.msk [vmem:[#allocation2 + $0x1a8] sm:$0xff] %vm1113, %v1102
        %1168 = vst.msk [vmem:[#allocation2 + $0x1b0] sm:$0xff] %vm1113, %v1103
        %1169 = vst.msk [vmem:[#allocation2 + $0x1b8] sm:$0xff] %vm1113, %v1104
        %1170 = vst.msk [vmem:[#allocation2 + $0x1c0] sm:$0xff] %vm1113, %v1105
        %1171 = vst.msk [vmem:[#allocation2 + $0x1c8] sm:$0xff] %vm1113, %v1106
        %1172 = vst.msk [vmem:[#allocation2 + $0x1d0] sm:$0xff] %vm1113, %v1107
        %1173 = vst.msk [vmem:[#allocation2 + $0x1d8] sm:$0xff] %vm1113, %v1108
        %1174 = vst.msk [vmem:[#allocation2 + $0x1e0] sm:$0xff] %vm1113, %v1109
        %1175 = vst.msk [vmem:[#allocation2 + $0x1e8] sm:$0xff] %vm1113, %v1110
        %1176 = vst.msk [vmem:[#allocation2 + $0x1f0] sm:$0xff] %vm1113, %v1111
        %1177 = vst.msk [vmem:[#allocation2 + $0x1f8] sm:$0xff] %vm1113, %v1112
        // Predicated region
        $region37: #{tpu_custom_call.1} parent=27 // pred_check
          %p1178 = pneg %p307
        $region38: #{tpu_custom_call.1} parent=27 // pred_check_branch
          %1180 = sbr.rel (%p1178) target = $region40
        $region39: #{tpu_custom_call.1} parent=27 // pred_region
          %v1181 = vld [vmem:[#allocation2] sm:$0xff]
          %v1182 = vld [vmem:[#allocation2 + $0x8] sm:$0xff]
          %v1183 = vld [vmem:[#allocation2 + $0x10] sm:$0xff]
          %v1184 = vld [vmem:[#allocation2 + $0x18] sm:$0xff]
          %v1185 = vld [vmem:[#allocation2 + $0x20] sm:$0xff]
          %v1186 = vld [vmem:[#allocation2 + $0x28] sm:$0xff]
          %v1187 = vld [vmem:[#allocation2 + $0x30] sm:$0xff]
          %v1188 = vld [vmem:[#allocation2 + $0x38] sm:$0xff]
          %v1189 = vld [vmem:[#allocation2 + $0x40] sm:$0xff]
          %v1190 = vld [vmem:[#allocation2 + $0x48] sm:$0xff]
          %v1191 = vld [vmem:[#allocation2 + $0x50] sm:$0xff]
          %v1192 = vld [vmem:[#allocation2 + $0x58] sm:$0xff]
          %v1193 = vld [vmem:[#allocation2 + $0x60] sm:$0xff]
          %v1194 = vld [vmem:[#allocation2 + $0x68] sm:$0xff]
          %v1195 = vld [vmem:[#allocation2 + $0x70] sm:$0xff]
          %v1196 = vld [vmem:[#allocation2 + $0x78] sm:$0xff]
          %v1197 = vld [vmem:[#allocation2 + $0x80] sm:$0xff]
          %v1198 = vld [vmem:[#allocation2 + $0x88] sm:$0xff]
          %v1199 = vld [vmem:[#allocation2 + $0x90] sm:$0xff]
          %v1200 = vld [vmem:[#allocation2 + $0x98] sm:$0xff]
          %v1201 = vld [vmem:[#allocation2 + $0xa0] sm:$0xff]
          %v1202 = vld [vmem:[#allocation2 + $0xa8] sm:$0xff]
          %v1203 = vld [vmem:[#allocation2 + $0xb0] sm:$0xff]
          %v1204 = vld [vmem:[#allocation2 + $0xb8] sm:$0xff]
          %v1205 = vld [vmem:[#allocation2 + $0xc0] sm:$0xff]
          %v1206 = vld [vmem:[#allocation2 + $0xc8] sm:$0xff]
          %v1207 = vld [vmem:[#allocation2 + $0xd0] sm:$0xff]
          %v1208 = vld [vmem:[#allocation2 + $0xd8] sm:$0xff]
          %v1209 = vld [vmem:[#allocation2 + $0xe0] sm:$0xff]
          %v1210 = vld [vmem:[#allocation2 + $0xe8] sm:$0xff]
          %v1211 = vld [vmem:[#allocation2 + $0xf0] sm:$0xff]
          %v1212 = vld [vmem:[#allocation2 + $0xf8] sm:$0xff]
          %v1213 = vld [vmem:[#allocation2 + $0x100] sm:$0xff]
          %v1214 = vld [vmem:[#allocation2 + $0x108] sm:$0xff]
          %v1215 = vld [vmem:[#allocation2 + $0x110] sm:$0xff]
          %v1216 = vld [vmem:[#allocation2 + $0x118] sm:$0xff]
          %v1217 = vld [vmem:[#allocation2 + $0x120] sm:$0xff]
          %v1218 = vld [vmem:[#allocation2 + $0x128] sm:$0xff]
          %v1219 = vld [vmem:[#allocation2 + $0x130] sm:$0xff]
          %v1220 = vld [vmem:[#allocation2 + $0x138] sm:$0xff]
          %v1221 = vld [vmem:[#allocation2 + $0x140] sm:$0xff]
          %v1222 = vld [vmem:[#allocation2 + $0x148] sm:$0xff]
          %v1223 = vld [vmem:[#allocation2 + $0x150] sm:$0xff]
          %v1224 = vld [vmem:[#allocation2 + $0x158] sm:$0xff]
          %v1225 = vld [vmem:[#allocation2 + $0x160] sm:$0xff]
          %v1226 = vld [vmem:[#allocation2 + $0x168] sm:$0xff]
          %v1227 = vld [vmem:[#allocation2 + $0x170] sm:$0xff]
          %v1228 = vld [vmem:[#allocation2 + $0x178] sm:$0xff]
          %v1229 = vld [vmem:[#allocation2 + $0x180] sm:$0xff]
          %v1230 = vld [vmem:[#allocation2 + $0x188] sm:$0xff]
          %v1231 = vld [vmem:[#allocation2 + $0x190] sm:$0xff]
          %v1232 = vld [vmem:[#allocation2 + $0x198] sm:$0xff]
          %v1233 = vld [vmem:[#allocation2 + $0x1a0] sm:$0xff]
          %v1234 = vld [vmem:[#allocation2 + $0x1a8] sm:$0xff]
          %v1235 = vld [vmem:[#allocation2 + $0x1b0] sm:$0xff]
          %v1236 = vld [vmem:[#allocation2 + $0x1b8] sm:$0xff]
          %v1237 = vld [vmem:[#allocation2 + $0x1c0] sm:$0xff]
          %v1238 = vld [vmem:[#allocation2 + $0x1c8] sm:$0xff]
          %v1239 = vld [vmem:[#allocation2 + $0x1d0] sm:$0xff]
          %v1240 = vld [vmem:[#allocation2 + $0x1d8] sm:$0xff]
          %v1241 = vld [vmem:[#allocation2 + $0x1e0] sm:$0xff]
          %v1242 = vld [vmem:[#allocation2 + $0x1e8] sm:$0xff]
          %v1243 = vld [vmem:[#allocation2 + $0x1f0] sm:$0xff]
          %v1244 = vld [vmem:[#allocation2 + $0x1f8] sm:$0xff]
          %1245 = vst.msk [vmem:[%s304] sm:$0xff] %vm1113, %v1181
          %1246 = vst.msk [vmem:[%s304 + $0x8] sm:$0xff] %vm1113, %v1182
          %1247 = vst.msk [vmem:[%s304 + $0x10] sm:$0xff] %vm1113, %v1183
          %1248 = vst.msk [vmem:[%s304 + $0x18] sm:$0xff] %vm1113, %v1184
          %1249 = vst.msk [vmem:[%s304 + $0x20] sm:$0xff] %vm1113, %v1185
          %1250 = vst.msk [vmem:[%s304 + $0x28] sm:$0xff] %vm1113, %v1186
          %1251 = vst.msk [vmem:[%s304 + $0x30] sm:$0xff] %vm1113, %v1187
          %1252 = vst.msk [vmem:[%s304 + $0x38] sm:$0xff] %vm1113, %v1188
          %1253 = vst.msk [vmem:[%s304 + $0x40] sm:$0xff] %vm1113, %v1189
          %1254 = vst.msk [vmem:[%s304 + $0x48] sm:$0xff] %vm1113, %v1190
          %1255 = vst.msk [vmem:[%s304 + $0x50] sm:$0xff] %vm1113, %v1191
          %1256 = vst.msk [vmem:[%s304 + $0x58] sm:$0xff] %vm1113, %v1192
          %1257 = vst.msk [vmem:[%s304 + $0x60] sm:$0xff] %vm1113, %v1193
          %1258 = vst.msk [vmem:[%s304 + $0x68] sm:$0xff] %vm1113, %v1194
          %1259 = vst.msk [vmem:[%s304 + $0x70] sm:$0xff] %vm1113, %v1195
          %1260 = vst.msk [vmem:[%s304 + $0x78] sm:$0xff] %vm1113, %v1196
          %1261 = vst.msk [vmem:[%s304 + $0x80] sm:$0xff] %vm1113, %v1197
          %1262 = vst.msk [vmem:[%s304 + $0x88] sm:$0xff] %vm1113, %v1198
          %1263 = vst.msk [vmem:[%s304 + $0x90] sm:$0xff] %vm1113, %v1199
          %1264 = vst.msk [vmem:[%s304 + $0x98] sm:$0xff] %vm1113, %v1200
          %1265 = vst.msk [vmem:[%s304 + $0xa0] sm:$0xff] %vm1113, %v1201
          %1266 = vst.msk [vmem:[%s304 + $0xa8] sm:$0xff] %vm1113, %v1202
          %1267 = vst.msk [vmem:[%s304 + $0xb0] sm:$0xff] %vm1113, %v1203
          %1268 = vst.msk [vmem:[%s304 + $0xb8] sm:$0xff] %vm1113, %v1204
          %1269 = vst.msk [vmem:[%s304 + $0xc0] sm:$0xff] %vm1113, %v1205
          %1270 = vst.msk [vmem:[%s304 + $0xc8] sm:$0xff] %vm1113, %v1206
          %1271 = vst.msk [vmem:[%s304 + $0xd0] sm:$0xff] %vm1113, %v1207
          %1272 = vst.msk [vmem:[%s304 + $0xd8] sm:$0xff] %vm1113, %v1208
          %1273 = vst.msk [vmem:[%s304 + $0xe0] sm:$0xff] %vm1113, %v1209
          %1274 = vst.msk [vmem:[%s304 + $0xe8] sm:$0xff] %vm1113, %v1210
          %1275 = vst.msk [vmem:[%s304 + $0xf0] sm:$0xff] %vm1113, %v1211
          %1276 = vst.msk [vmem:[%s304 + $0xf8] sm:$0xff] %vm1113, %v1212
          %1277 = vst.msk [vmem:[%s304 + $0x100] sm:$0xff] %vm1113, %v1213
          %1278 = vst.msk [vmem:[%s304 + $0x108] sm:$0xff] %vm1113, %v1214
          %1279 = vst.msk [vmem:[%s304 + $0x110] sm:$0xff] %vm1113, %v1215
          %1280 = vst.msk [vmem:[%s304 + $0x118] sm:$0xff] %vm1113, %v1216
          %1281 = vst.msk [vmem:[%s304 + $0x120] sm:$0xff] %vm1113, %v1217
          %1282 = vst.msk [vmem:[%s304 + $0x128] sm:$0xff] %vm1113, %v1218
          %1283 = vst.msk [vmem:[%s304 + $0x130] sm:$0xff] %vm1113, %v1219
          %1284 = vst.msk [vmem:[%s304 + $0x138] sm:$0xff] %vm1113, %v1220
          %1285 = vst.msk [vmem:[%s304 + $0x140] sm:$0xff] %vm1113, %v1221
          %1286 = vst.msk [vmem:[%s304 + $0x148] sm:$0xff] %vm1113, %v1222
          %1287 = vst.msk [vmem:[%s304 + $0x150] sm:$0xff] %vm1113, %v1223
          %1288 = vst.msk [vmem:[%s304 + $0x158] sm:$0xff] %vm1113, %v1224
          %1289 = vst.msk [vmem:[%s304 + $0x160] sm:$0xff] %vm1113, %v1225
          %1290 = vst.msk [vmem:[%s304 + $0x168] sm:$0xff] %vm1113, %v1226
          %1291 = vst.msk [vmem:[%s304 + $0x170] sm:$0xff] %vm1113, %v1227
          %1292 = vst.msk [vmem:[%s304 + $0x178] sm:$0xff] %vm1113, %v1228
          %1293 = vst.msk [vmem:[%s304 + $0x180] sm:$0xff] %vm1113, %v1229
          %1294 = vst.msk [vmem:[%s304 + $0x188] sm:$0xff] %vm1113, %v1230
          %1295 = vst.msk [vmem:[%s304 + $0x190] sm:$0xff] %vm1113, %v1231
          %1296 = vst.msk [vmem:[%s304 + $0x198] sm:$0xff] %vm1113, %v1232
          %1297 = vst.msk [vmem:[%s304 + $0x1a0] sm:$0xff] %vm1113, %v1233
          %1298 = vst.msk [vmem:[%s304 + $0x1a8] sm:$0xff] %vm1113, %v1234
          %1299 = vst.msk [vmem:[%s304 + $0x1b0] sm:$0xff] %vm1113, %v1235
          %1300 = vst.msk [vmem:[%s304 + $0x1b8] sm:$0xff] %vm1113, %v1236
          %1301 = vst.msk [vmem:[%s304 + $0x1c0] sm:$0xff] %vm1113, %v1237
          %1302 = vst.msk [vmem:[%s304 + $0x1c8] sm:$0xff] %vm1113, %v1238
          %1303 = vst.msk [vmem:[%s304 + $0x1d0] sm:$0xff] %vm1113, %v1239
          %1304 = vst.msk [vmem:[%s304 + $0x1d8] sm:$0xff] %vm1113, %v1240
          %1305 = vst.msk [vmem:[%s304 + $0x1e0] sm:$0xff] %vm1113, %v1241
          %1306 = vst.msk [vmem:[%s304 + $0x1e8] sm:$0xff] %vm1113, %v1242
          %1307 = vst.msk [vmem:[%s304 + $0x1f0] sm:$0xff] %vm1113, %v1243
          %1308 = vst.msk [vmem:[%s304 + $0x1f8] sm:$0xff] %vm1113, %v1244
          %v1309 = vsel %vm1113, %v1181, 0.0
          %v1310 = vsel %vm1113, %v1182, 0.0
          %v1311 = vadd.f32 %v1309, %v1310
          %v1312 = vsel %vm1113, %v1183, 0.0
          %v1313 = vadd.f32 %v1311, %v1312
          %v1314 = vsel %vm1113, %v1184, 0.0
          %v1315 = vadd.f32 %v1313, %v1314
          %v1316 = vsel %vm1113, %v1185, 0.0
          %v1317 = vadd.f32 %v1315, %v1316
          %v1318 = vsel %vm1113, %v1186, 0.0
          %v1319 = vadd.f32 %v1317, %v1318
          %v1320 = vsel %vm1113, %v1187, 0.0
          %v1321 = vadd.f32 %v1319, %v1320
          %v1322 = vsel %vm1113, %v1188, 0.0
          %v1323 = vadd.f32 %v1321, %v1322
          %v1324 = vsel %vm1113, %v1189, 0.0
          %v1325 = vadd.f32 %v1323, %v1324
          %v1326 = vsel %vm1113, %v1190, 0.0
          %v1327 = vadd.f32 %v1325, %v1326
          %v1328 = vsel %vm1113, %v1191, 0.0
          %v1329 = vadd.f32 %v1327, %v1328
          %v1330 = vsel %vm1113, %v1192, 0.0
          %v1331 = vadd.f32 %v1329, %v1330
          %v1332 = vsel %vm1113, %v1193, 0.0
          %v1333 = vadd.f32 %v1331, %v1332
          %v1334 = vsel %vm1113, %v1194, 0.0
          %v1335 = vadd.f32 %v1333, %v1334
          %v1336 = vsel %vm1113, %v1195, 0.0
          %v1337 = vadd.f32 %v1335, %v1336
          %v1338 = vsel %vm1113, %v1196, 0.0
          %v1339 = vadd.f32 %v1337, %v1338
          %v1340 = vsel %vm1113, %v1197, 0.0
          %v1341 = vadd.f32 %v1339, %v1340
          %v1342 = vsel %vm1113, %v1198, 0.0
          %v1343 = vadd.f32 %v1341, %v1342
          %v1344 = vsel %vm1113, %v1199, 0.0
          %v1345 = vadd.f32 %v1343, %v1344
          %v1346 = vsel %vm1113, %v1200, 0.0
          %v1347 = vadd.f32 %v1345, %v1346
          %v1348 = vsel %vm1113, %v1201, 0.0
          %v1349 = vadd.f32 %v1347, %v1348
          %v1350 = vsel %vm1113, %v1202, 0.0
          %v1351 = vadd.f32 %v1349, %v1350
          %v1352 = vsel %vm1113, %v1203, 0.0
          %v1353 = vadd.f32 %v1351, %v1352
          %v1354 = vsel %vm1113, %v1204, 0.0
          %v1355 = vadd.f32 %v1353, %v1354
          %v1356 = vsel %vm1113, %v1205, 0.0
          %v1357 = vadd.f32 %v1355, %v1356
          %v1358 = vsel %vm1113, %v1206, 0.0
          %v1359 = vadd.f32 %v1357, %v1358
          %v1360 = vsel %vm1113, %v1207, 0.0
          %v1361 = vadd.f32 %v1359, %v1360
          %v1362 = vsel %vm1113, %v1208, 0.0
          %v1363 = vadd.f32 %v1361, %v1362
          %v1364 = vsel %vm1113, %v1209, 0.0
          %v1365 = vadd.f32 %v1363, %v1364
          %v1366 = vsel %vm1113, %v1210, 0.0
          %v1367 = vadd.f32 %v1365, %v1366
          %v1368 = vsel %vm1113, %v1211, 0.0
          %v1369 = vadd.f32 %v1367, %v1368
          %v1370 = vsel %vm1113, %v1212, 0.0
          %v1371 = vadd.f32 %v1369, %v1370
          %v1372 = vsel %vm1113, %v1213, 0.0
          %v1373 = vadd.f32 %v1371, %v1372
          %v1374 = vsel %vm1113, %v1214, 0.0
          %v1375 = vadd.f32 %v1373, %v1374
          %v1376 = vsel %vm1113, %v1215, 0.0
          %v1377 = vadd.f32 %v1375, %v1376
          %v1378 = vsel %vm1113, %v1216, 0.0
          %v1379 = vadd.f32 %v1377, %v1378
          %v1380 = vsel %vm1113, %v1217, 0.0
          %v1381 = vadd.f32 %v1379, %v1380
          %v1382 = vsel %vm1113, %v1218, 0.0
          %v1383 = vadd.f32 %v1381, %v1382
          %v1384 = vsel %vm1113, %v1219, 0.0
          %v1385 = vadd.f32 %v1383, %v1384
          %v1386 = vsel %vm1113, %v1220, 0.0
          %v1387 = vadd.f32 %v1385, %v1386
          %v1388 = vsel %vm1113, %v1221, 0.0
          %v1389 = vadd.f32 %v1387, %v1388
          %v1390 = vsel %vm1113, %v1222, 0.0
          %v1391 = vadd.f32 %v1389, %v1390
          %v1392 = vsel %vm1113, %v1223, 0.0
          %v1393 = vadd.f32 %v1391, %v1392
          %v1394 = vsel %vm1113, %v1224, 0.0
          %v1395 = vadd.f32 %v1393, %v1394
          %v1396 = vsel %vm1113, %v1225, 0.0
          %v1397 = vadd.f32 %v1395, %v1396
          %v1398 = vsel %vm1113, %v1226, 0.0
          %v1399 = vadd.f32 %v1397, %v1398
          %v1400 = vsel %vm1113, %v1227, 0.0
          %v1401 = vadd.f32 %v1399, %v1400
          %v1402 = vsel %vm1113, %v1228, 0.0
          %v1403 = vadd.f32 %v1401, %v1402
          %v1404 = vsel %vm1113, %v1229, 0.0
          %v1405 = vadd.f32 %v1403, %v1404
          %v1406 = vsel %vm1113, %v1230, 0.0
          %v1407 = vadd.f32 %v1405, %v1406
          %v1408 = vsel %vm1113, %v1231, 0.0
          %v1409 = vadd.f32 %v1407, %v1408
          %v1410 = vsel %vm1113, %v1232, 0.0
          %v1411 = vadd.f32 %v1409, %v1410
          %v1412 = vsel %vm1113, %v1233, 0.0
          %v1413 = vadd.f32 %v1411, %v1412
          %v1414 = vsel %vm1113, %v1234, 0.0
          %v1415 = vadd.f32 %v1413, %v1414
          %v1416 = vsel %vm1113, %v1235, 0.0
          %v1417 = vadd.f32 %v1415, %v1416
          %v1418 = vsel %vm1113, %v1236, 0.0
          %v1419 = vadd.f32 %v1417, %v1418
          %v1420 = vsel %vm1113, %v1237, 0.0
          %v1421 = vadd.f32 %v1419, %v1420
          %v1422 = vsel %vm1113, %v1238, 0.0
          %v1423 = vadd.f32 %v1421, %v1422
          %v1424 = vsel %vm1113, %v1239, 0.0
          %v1425 = vadd.f32 %v1423, %v1424
          %v1426 = vsel %vm1113, %v1240, 0.0
          %v1427 = vadd.f32 %v1425, %v1426
          %v1428 = vsel %vm1113, %v1241, 0.0
          %v1429 = vadd.f32 %v1427, %v1428
          %v1430 = vsel %vm1113, %v1242, 0.0
          %v1431 = vadd.f32 %v1429, %v1430
          %v1432 = vsel %vm1113, %v1243, 0.0
          %v1433 = vadd.f32 %v1431, %v1432
          %v1434 = vsel %vm1113, %v1244, 0.0
          %v1435 = vadd.f32 %v1433, %v1434
          %v1436 = vrot.slane %v1435, 4
          %v1437 = vadd.f32 %v1435, %v1436
          %v1438 = vrot.slane %v1437, 2
          %v1439 = vadd.f32 %v1437, %v1438
          %v1440 = vrot.slane %v1439, 1
          %v1441 = vadd.f32 %v1439, %v1440
          %vm1442 = vcmask 516096
          %1443 = vst.msk [vmem:[%s280] sm:$0x1] %vm1442, %v1441
          %v1444 = vmul.f32 %v1181, %v1181
          %v1445 = vmul.f32 %v1182, %v1182
          %v1446 = vmul.f32 %v1183, %v1183
          %v1447 = vmul.f32 %v1184, %v1184
          %v1448 = vmul.f32 %v1185, %v1185
          %v1449 = vmul.f32 %v1186, %v1186
          %v1450 = vmul.f32 %v1187, %v1187
          %v1451 = vmul.f32 %v1188, %v1188
          %v1452 = vmul.f32 %v1189, %v1189
          %v1453 = vmul.f32 %v1190, %v1190
          %v1454 = vmul.f32 %v1191, %v1191
          %v1455 = vmul.f32 %v1192, %v1192
          %v1456 = vmul.f32 %v1193, %v1193
          %v1457 = vmul.f32 %v1194, %v1194
          %v1458 = vmul.f32 %v1195, %v1195
          %v1459 = vmul.f32 %v1196, %v1196
          %v1460 = vmul.f32 %v1197, %v1197
          %v1461 = vmul.f32 %v1198, %v1198
          %v1462 = vmul.f32 %v1199, %v1199
          %v1463 = vmul.f32 %v1200, %v1200
          %v1464 = vmul.f32 %v1201, %v1201
          %v1465 = vmul.f32 %v1202, %v1202
          %v1466 = vmul.f32 %v1203, %v1203
          %v1467 = vmul.f32 %v1204, %v1204
          %v1468 = vmul.f32 %v1205, %v1205
          %v1469 = vmul.f32 %v1206, %v1206
          %v1470 = vmul.f32 %v1207, %v1207
          %v1471 = vmul.f32 %v1208, %v1208
          %v1472 = vmul.f32 %v1209, %v1209
          %v1473 = vmul.f32 %v1210, %v1210
          %v1474 = vmul.f32 %v1211, %v1211
          %v1475 = vmul.f32 %v1212, %v1212
          %v1476 = vmul.f32 %v1213, %v1213
          %v1477 = vmul.f32 %v1214, %v1214
          %v1478 = vmul.f32 %v1215, %v1215
          %v1479 = vmul.f32 %v1216, %v1216
          %v1480 = vmul.f32 %v1217, %v1217
          %v1481 = vmul.f32 %v1218, %v1218
          %v1482 = vmul.f32 %v1219, %v1219
          %v1483 = vmul.f32 %v1220, %v1220
          %v1484 = vmul.f32 %v1221, %v1221
          %v1485 = vmul.f32 %v1222, %v1222
          %v1486 = vmul.f32 %v1223, %v1223
          %v1487 = vmul.f32 %v1224, %v1224
          %v1488 = vmul.f32 %v1225, %v1225
          %v1489 = vmul.f32 %v1226, %v1226
          %v1490 = vmul.f32 %v1227, %v1227
          %v1491 = vmul.f32 %v1228, %v1228
          %v1492 = vmul.f32 %v1229, %v1229
          %v1493 = vmul.f32 %v1230, %v1230
          %v1494 = vmul.f32 %v1231, %v1231
          %v1495 = vmul.f32 %v1232, %v1232
          %v1496 = vmul.f32 %v1233, %v1233
          %v1497 = vmul.f32 %v1234, %v1234
          %v1498 = vmul.f32 %v1235, %v1235
          %v1499 = vmul.f32 %v1236, %v1236
          %v1500 = vmul.f32 %v1237, %v1237
          %v1501 = vmul.f32 %v1238, %v1238
          %v1502 = vmul.f32 %v1239, %v1239
          %v1503 = vmul.f32 %v1240, %v1240
          %v1504 = vmul.f32 %v1241, %v1241
          %v1505 = vmul.f32 %v1242, %v1242
          %v1506 = vmul.f32 %v1243, %v1243
          %v1507 = vmul.f32 %v1244, %v1244
          %v1508 = vsel %vm1113, %v1444, 0.0
          %v1509 = vsel %vm1113, %v1445, 0.0
          %v1510 = vadd.f32 %v1508, %v1509
          %v1511 = vsel %vm1113, %v1446, 0.0
          %v1512 = vadd.f32 %v1510, %v1511
          %v1513 = vsel %vm1113, %v1447, 0.0
          %v1514 = vadd.f32 %v1512, %v1513
          %v1515 = vsel %vm1113, %v1448, 0.0
          %v1516 = vadd.f32 %v1514, %v1515
          %v1517 = vsel %vm1113, %v1449, 0.0
          %v1518 = vadd.f32 %v1516, %v1517
          %v1519 = vsel %vm1113, %v1450, 0.0
          %v1520 = vadd.f32 %v1518, %v1519
          %v1521 = vsel %vm1113, %v1451, 0.0
          %v1522 = vadd.f32 %v1520, %v1521
          %v1523 = vsel %vm1113, %v1452, 0.0
          %v1524 = vadd.f32 %v1522, %v1523
          %v1525 = vsel %vm1113, %v1453, 0.0
          %v1526 = vadd.f32 %v1524, %v1525
          %v1527 = vsel %vm1113, %v1454, 0.0
          %v1528 = vadd.f32 %v1526, %v1527
          %v1529 = vsel %vm1113, %v1455, 0.0
          %v1530 = vadd.f32 %v1528, %v1529
          %v1531 = vsel %vm1113, %v1456, 0.0
          %v1532 = vadd.f32 %v1530, %v1531
          %v1533 = vsel %vm1113, %v1457, 0.0
          %v1534 = vadd.f32 %v1532, %v1533
          %v1535 = vsel %vm1113, %v1458, 0.0
          %v1536 = vadd.f32 %v1534, %v1535
          %v1537 = vsel %vm1113, %v1459, 0.0
          %v1538 = vadd.f32 %v1536, %v1537
          %v1539 = vsel %vm1113, %v1460, 0.0
          %v1540 = vadd.f32 %v1538, %v1539
          %v1541 = vsel %vm1113, %v1461, 0.0
          %v1542 = vadd.f32 %v1540, %v1541
          %v1543 = vsel %vm1113, %v1462, 0.0
          %v1544 = vadd.f32 %v1542, %v1543
          %v1545 = vsel %vm1113, %v1463, 0.0
          %v1546 = vadd.f32 %v1544, %v1545
          %v1547 = vsel %vm1113, %v1464, 0.0
          %v1548 = vadd.f32 %v1546, %v1547
          %v1549 = vsel %vm1113, %v1465, 0.0
          %v1550 = vadd.f32 %v1548, %v1549
          %v1551 = vsel %vm1113, %v1466, 0.0
          %v1552 = vadd.f32 %v1550, %v1551
          %v1553 = vsel %vm1113, %v1467, 0.0
          %v1554 = vadd.f32 %v1552, %v1553
          %v1555 = vsel %vm1113, %v1468, 0.0
          %v1556 = vadd.f32 %v1554, %v1555
          %v1557 = vsel %vm1113, %v1469, 0.0
          %v1558 = vadd.f32 %v1556, %v1557
          %v1559 = vsel %vm1113, %v1470, 0.0
          %v1560 = vadd.f32 %v1558, %v1559
          %v1561 = vsel %vm1113, %v1471, 0.0
          %v1562 = vadd.f32 %v1560, %v1561
          %v1563 = vsel %vm1113, %v1472, 0.0
          %v1564 = vadd.f32 %v1562, %v1563
          %v1565 = vsel %vm1113, %v1473, 0.0
          %v1566 = vadd.f32 %v1564, %v1565
          %v1567 = vsel %vm1113, %v1474, 0.0
          %v1568 = vadd.f32 %v1566, %v1567
          %v1569 = vsel %vm1113, %v1475, 0.0
          %v1570 = vadd.f32 %v1568, %v1569
          %v1571 = vsel %vm1113, %v1476, 0.0
          %v1572 = vadd.f32 %v1570, %v1571
          %v1573 = vsel %vm1113, %v1477, 0.0
          %v1574 = vadd.f32 %v1572, %v1573
          %v1575 = vsel %vm1113, %v1478, 0.0
          %v1576 = vadd.f32 %v1574, %v1575
          %v1577 = vsel %vm1113, %v1479, 0.0
          %v1578 = vadd.f32 %v1576, %v1577
          %v1579 = vsel %vm1113, %v1480, 0.0
          %v1580 = vadd.f32 %v1578, %v1579
          %v1581 = vsel %vm1113, %v1481, 0.0
          %v1582 = vadd.f32 %v1580, %v1581
          %v1583 = vsel %vm1113, %v1482, 0.0
          %v1584 = vadd.f32 %v1582, %v1583
          %v1585 = vsel %vm1113, %v1483, 0.0
          %v1586 = vadd.f32 %v1584, %v1585
          %v1587 = vsel %vm1113, %v1484, 0.0
          %v1588 = vadd.f32 %v1586, %v1587
          %v1589 = vsel %vm1113, %v1485, 0.0
          %v1590 = vadd.f32 %v1588, %v1589
          %v1591 = vsel %vm1113, %v1486, 0.0
          %v1592 = vadd.f32 %v1590, %v1591
          %v1593 = vsel %vm1113, %v1487, 0.0
          %v1594 = vadd.f32 %v1592, %v1593
          %v1595 = vsel %vm1113, %v1488, 0.0
          %v1596 = vadd.f32 %v1594, %v1595
          %v1597 = vsel %vm1113, %v1489, 0.0
          %v1598 = vadd.f32 %v1596, %v1597
          %v1599 = vsel %vm1113, %v1490, 0.0
          %v1600 = vadd.f32 %v1598, %v1599
          %v1601 = vsel %vm1113, %v1491, 0.0
          %v1602 = vadd.f32 %v1600, %v1601
          %v1603 = vsel %vm1113, %v1492, 0.0
          %v1604 = vadd.f32 %v1602, %v1603
          %v1605 = vsel %vm1113, %v1493, 0.0
          %v1606 = vadd.f32 %v1604, %v1605
          %v1607 = vsel %vm1113, %v1494, 0.0
          %v1608 = vadd.f32 %v1606, %v1607
          %v1609 = vsel %vm1113, %v1495, 0.0
          %v1610 = vadd.f32 %v1608, %v1609
          %v1611 = vsel %vm1113, %v1496, 0.0
          %v1612 = vadd.f32 %v1610, %v1611
          %v1613 = vsel %vm1113, %v1497, 0.0
          %v1614 = vadd.f32 %v1612, %v1613
          %v1615 = vsel %vm1113, %v1498, 0.0
          %v1616 = vadd.f32 %v1614, %v1615
          %v1617 = vsel %vm1113, %v1499, 0.0
          %v1618 = vadd.f32 %v1616, %v1617
          %v1619 = vsel %vm1113, %v1500, 0.0
          %v1620 = vadd.f32 %v1618, %v1619
          %v1621 = vsel %vm1113, %v1501, 0.0
          %v1622 = vadd.f32 %v1620, %v1621
          %v1623 = vsel %vm1113, %v1502, 0.0
          %v1624 = vadd.f32 %v1622, %v1623
          %v1625 = vsel %vm1113, %v1503, 0.0
          %v1626 = vadd.f32 %v1624, %v1625
          %v1627 = vsel %vm1113, %v1504, 0.0
          %v1628 = vadd.f32 %v1626, %v1627
          %v1629 = vsel %vm1113, %v1505, 0.0
          %v1630 = vadd.f32 %v1628, %v1629
          %v1631 = vsel %vm1113, %v1506, 0.0
          %v1632 = vadd.f32 %v1630, %v1631
          %v1633 = vsel %vm1113, %v1507, 0.0
          %v1634 = vadd.f32 %v1632, %v1633
          %v1635 = vrot.slane %v1634, 4
          %v1636 = vadd.f32 %v1634, %v1635
          %v1637 = vrot.slane %v1636, 2
          %v1638 = vadd.f32 %v1636, %v1637
          %v1639 = vrot.slane %v1638, 1
          %v1640 = vadd.f32 %v1638, %v1639
          %1641 = vst.msk [vmem:[%s286] sm:$0x1] %vm1442, %v1640
        $region40: #{tpu_custom_call.1} parent=27 // pred_fallthru
          _
        %s1642 = smul.u32 64, %s30
        %p1643 = scmp.lt.s32.totalorder %s1642, 255
        %s1644 = scalar_select %p1643, %s1642, 255
        %p1645 = scmp.lt.s32.totalorder %s31, 0
        %s1646 = scalar_select %p1645, %s31, 0
        %s1647 = sadd.s32 %s1646, %s1644
        %s1648 = smul.addr %s1647, 8
        %s1649 = scalar_lea.vmem %s2, %s1648
        %s1650 = sand.u32 %s138, 1
        %s1651 = scalar_lea.sflag [#allocation5], %s1650
        %s1652 = sand.u32 %s138, 1
        %s1653 = scalar_lea.vmem [#allocation6], %s1652
        %s1654 = sand.u32 %s166, 1
        %s1655 = scalar_lea.sflag [#allocation8], %s1654
        %s1656 = sand.u32 %s166, 1
        %s1657 = scalar_lea.vmem [#allocation7], %s1656
        // Predicated region
        $region41: #{tpu_custom_call.1} parent=27 // pred_check
          %p1658 = pneg %p120
        $region42: #{tpu_custom_call.1} parent=27 // pred_check_branch
          %1660 = sbr.rel (%p1658) target = $region44
        $region43: #{tpu_custom_call.1} parent=27 // pred_region
          %s1661 = smul.u32 64, %s30
        $region44: #{tpu_custom_call.1} parent=27 // pred_fallthru
          _
        // Predicated region
        $region45: #{tpu_custom_call.1} parent=27 // pred_check
          %p1662 = pneg %p148
        $region46: #{tpu_custom_call.1} parent=27 // pred_check_branch
          %1664 = sbr.rel (%p1662) target = $region48
        $region47: #{tpu_custom_call.1} parent=27 // pred_region
          %s1666 = ssub.s32 16, 16
          %1667 = vsyncadd %s1651, %s1666
          %s1668 = sadd.s32 %s31, %s30
          %s1669 = smul.addr %s1668, 16
          %s1670 = scalar_lea.hbm %s3, %s1669
          %s1672 = sshll.u32 %s1653, 4
          %s1673 = int_to_ptr.vmem [resolvable:$true] %s1672
          %1675 = dma.vmem_to_hbm [thread:$0]  %s1673, 16, %s1670, %s1651
        $region48: #{tpu_custom_call.1} parent=27 // pred_fallthru
          _
        // Predicated region
        $region49: #{tpu_custom_call.1} parent=27 // pred_check
          %p1676 = pneg %p176
        $region50: #{tpu_custom_call.1} parent=27 // pred_check_branch
          %1678 = sbr.rel (%p1676) target = $region52
        $region51: #{tpu_custom_call.1} parent=27 // pred_region
          %s1680 = ssub.s32 16, 16
          %1681 = vsyncadd %s1655, %s1680
          %s1682 = sadd.s32 %s31, %s30
          %s1683 = smul.addr %s1682, 16
          %s1684 = scalar_lea.hbm %s4, %s1683
          %s1686 = sshll.u32 %s1657, 4
          %s1687 = int_to_ptr.vmem [resolvable:$true] %s1686
          %1689 = dma.vmem_to_hbm [thread:$0]  %s1687, 16, %s1684, %s1655
        $region52: #{tpu_custom_call.1} parent=27 // pred_fallthru
          _
      $region28: #{tpu_custom_call.1} parent=5 // pred_fallthru
        _
      %p1690 = scmp.le.s32.totalorder 2, %s20
      // Predicated region
      $region53: #{tpu_custom_call.1} parent=5 // pred_check
        %p1691 = pneg %p1690
      $region54: #{tpu_custom_call.1} parent=5 // pred_check_branch
        %1693 = sbr.rel (%p1691) target = $region56
      $region55: #{tpu_custom_call.1} parent=5 // pred_region
        %s1694 = ssub.s32 %s20, 2
        // Predicated region
        $region57: #{tpu_custom_call.1} parent=55 // pred_check
          %p1695 = pneg %p126
        $region58: #{tpu_custom_call.1} parent=55 // pred_check_branch
          %1697 = sbr.rel (%p1695) target = $region60
        $region59: #{tpu_custom_call.1} parent=55 // pred_region
          %s1698 = smul.u32 64, %s33
          %p1699 = scmp.lt.s32.totalorder %s1698, 255
          %s1700 = scalar_select %p1699, %s1698, 255
          %p1701 = scmp.lt.s32.totalorder %s34, 0
          %s1702 = scalar_select %p1701, %s34, 0
          %s1703 = sadd.s32 %s1702, %s1700
          %s1704 = smul.addr %s1703, 8
          %s1705 = scalar_lea.vmem %s2, %s1704
        $region60: #{tpu_custom_call.1} parent=55 // pred_fallthru
          _
        // Predicated region
        $region61: #{tpu_custom_call.1} parent=55 // pred_check
          %p1706 = pneg %p154
        $region62: #{tpu_custom_call.1} parent=55 // pred_check_branch
          %1708 = sbr.rel (%p1706) target = $region64
        $region63: #{tpu_custom_call.1} parent=55 // pred_region
          %s1709 = sand.u32 %s139, 1
          %s1710 = scalar_lea.sflag [#allocation5], %s1709
          %s1711 = sand.u32 %s139, 1
          %s1712 = scalar_lea.vmem [#allocation6], %s1711
          %1713 = dma.done %s1710, 16
        $region64: #{tpu_custom_call.1} parent=55 // pred_fallthru
          _
        // Predicated region
        $region65: #{tpu_custom_call.1} parent=55 // pred_check
          %p1714 = pneg %p182
        $region66: #{tpu_custom_call.1} parent=55 // pred_check_branch
          %1716 = sbr.rel (%p1714) target = $region68
        $region67: #{tpu_custom_call.1} parent=55 // pred_region
          %s1717 = sand.u32 %s167, 1
          %s1718 = scalar_lea.sflag [#allocation8], %s1717
          %s1719 = sand.u32 %s167, 1
          %s1720 = scalar_lea.vmem [#allocation7], %s1719
          %1721 = dma.done %s1718, 16
        $region68: #{tpu_custom_call.1} parent=55 // pred_fallthru
          _
      $region56: #{tpu_custom_call.1} parent=5 // pred_fallthru
        _
    $region6: #{tpu_custom_call.1} parent=1 // loop_footer
      %s24 = sadd.s32 1, %s20
    $region7: #{tpu_custom_call.1} parent=1 // loop_footer_branch
      %19 = sbr.rel target = $region3
    $region8: #{tpu_custom_call.1} parent=1 // loop_exit
      _
    %1722 = vsyncpa [#allocation4], 1
    %s1723 = scalar_lea.sflag [#allocation4], 1
    %1724 = vsyncpa %s1723, 1
    %1725 = vsyncpa [#allocation5], 1
    %s1726 = scalar_lea.sflag [#allocation5], 1
    %1727 = vsyncpa %s1726, 1
    %1728 = vsyncpa [#allocation8], 1
    %s1729 = scalar_lea.sflag [#allocation8], 1
    %1730 = vsyncpa %s1729, 1

</llo_original>
